<compile_context>
chip_gen: v5e
topology: v5e:2x2
jax: 0.10.0
libtpu: 0.0.40
codegen_flags: <defaults>
</compile_context>

<pallas_src>
import math
import functools

import jax
import jax.numpy as jnp
from jax.experimental import pallas as pl
from jax.experimental.pallas import tpu as pltpu


# ----------------------------- helpers --------------------------------------

def _round_up(n, m):
    return ((n + m - 1) // m) * m


def _layer_norm(x, w, b, eps=1e-5):
    mu = jnp.mean(x, axis=-1, keepdims=True)
    var = jnp.mean((x - mu) * (x - mu), axis=-1, keepdims=True)
    return (x - mu) * jax.lax.rsqrt(var + eps) * w + b


def build_positional_encoding(n_rows, d_model):
    assert d_model % 2 == 0, "PositionalEncoding (and the torch module) require even d_model"
    position = jnp.arange(n_rows, dtype=jnp.float32)[:, None]
    div_term = jnp.exp(jnp.arange(0, d_model, 2, dtype=jnp.float32)
                       * (-(math.log(10000.0) / d_model)))
    ang = position * div_term                      # (n_rows, d_model//2)
    pe = jnp.zeros((n_rows, d_model), dtype=jnp.float32)
    pe = pe.at[:, 0::2].set(jnp.sin(ang))
    pe = pe.at[:, 1::2].set(jnp.cos(ang))
    return pe


# ----------------------------- Pallas kernel --------------------------------

def generator_kernel(src_ref, pe_ref,
                     wattn_ref, w1_ref, w2_ref, wfc_ref,
                     scal_ref, out_ref):
    num_layers = wattn_ref.shape[0]
    d_model = wattn_ref.shape[-1]
    hidden_pad = w1_ref.shape[-1]
    out_cols = wfc_ref.shape[-1]

    # positional encoding (+ dropout == identity at inference); keep x in f32.
    x = src_ref[...] + pe_ref[...]

    for l in range(num_layers):          # static unroll, num_layers is small
        # packed per-layer scalars (single DMA stream), static slices
        b_attn = scal_ref[l, 0:1, :d_model]
        ln1w   = scal_ref[l, 1:2, :d_model]
        ln1b   = scal_ref[l, 2:3, :d_model]
        b1     = scal_ref[l, 3:4, :hidden_pad]
        b2     = scal_ref[l, 4:5, :d_model]
        ln2w   = scal_ref[l, 5:6, :d_model]
        ln2b   = scal_ref[l, 6:7, :d_model]

        # --- attention block: folded W_v @ W_o, single bf16 GEMM, f32 acc ---
        attn = jnp.dot(x.astype(jnp.bfloat16), wattn_ref[l],
                       preferred_element_type=jnp.float32) + b_attn
        x = _layer_norm(x + attn, ln1w, ln1b)

        # --- feed-forward block (ReLU), bf16 GEMMs, f32 acc; hidden lane-padded ---
        h = jnp.maximum(
            jnp.dot(x.astype(jnp.bfloat16), w1_ref[l],
                    preferred_element_type=jnp.float32) + b1,
            0.0)
        ff = jnp.dot(h.astype(jnp.bfloat16), w2_ref[l],
                     preferred_element_type=jnp.float32) + b2
        x = _layer_norm(x + ff, ln2w, ln2b)

    # final fc -> lane-dense padded (tb, out_cols) store; wrapper slices columns.
    bfc = scal_ref[num_layers, 0:1, :out_cols]
    out_ref[...] = (jnp.dot(x.astype(jnp.bfloat16), wfc_ref[...],
                            preferred_element_type=jnp.float32) + bfc)


# ------------------------------ parameters ----------------------------------

def init_params(key, d_model, hidden_size, output_size, num_layers):
    """PyTorch-layout parameters (full QKV), weights as (in, out)."""
    ks = jax.random.split(key, 7)
    s = 0.05
    return {
        "wqkv": s * jax.random.normal(ks[0], (num_layers, d_model, 3 * d_model), jnp.float32),
        "bqkv": jnp.zeros((num_layers, 1, 3 * d_model), jnp.float32),
        "wo":   s * jax.random.normal(ks[1], (num_layers, d_model, d_model), jnp.float32),
        "bo":   jnp.zeros((num_layers, 1, d_model), jnp.float32),
        "ln1w": jnp.ones((num_layers, 1, d_model), jnp.float32),
        "ln1b": jnp.zeros((num_layers, 1, d_model), jnp.float32),
        "w1":   s * jax.random.normal(ks[2], (num_layers, d_model, hidden_size), jnp.float32),
        "b1":   s * jax.random.normal(ks[3], (num_layers, 1, hidden_size), jnp.float32),
        "w2":   s * jax.random.normal(ks[4], (num_layers, hidden_size, d_model), jnp.float32),
        "b2":   jnp.zeros((num_layers, 1, d_model), jnp.float32),
        "ln2w": jnp.ones((num_layers, 1, d_model), jnp.float32),
        "ln2b": jnp.zeros((num_layers, 1, d_model), jnp.float32),
        "wfc":  s * jax.random.normal(ks[5], (d_model, output_size), jnp.float32),
        "bfc":  s * jax.random.normal(ks[6], (1, output_size), jnp.float32),
    }


def prepare_params(params, max_len=5000):
    """One-time host-side algebra:
       * drop Q/K, fold V-proj into out_proj,
       * zero-pad hidden dim and fc columns to lane multiples (bit-identical math),
       * pack all tiny f32 vectors into one (L+1, 8, W) slab,
       * precompute the positional-encoding table,
       * cast GEMM weights to bf16."""
    num_layers, d_model, _ = params["wo"].shape
    hidden_size = params["w1"].shape[-1]
    output_size = params["wfc"].shape[-1]

    # attention fold
    wv = params["wqkv"][:, :, 2 * d_model:3 * d_model]        # (L, d, d)
    bv = params["bqkv"][:, :, 2 * d_model:3 * d_model]        # (L, 1, d)
    w_attn = jnp.einsum("lij,ljk->lik", wv, params["wo"])     # W_v @ W_o
    b_attn = jnp.einsum("lxj,ljk->lxk", bv, params["wo"]) + params["bo"]

    # lane-dense FFN hidden (ReLU(0+0)=0, zero rows of w2 add nothing)
    hidden_pad = _round_up(hidden_size, 128)
    w1 = jnp.zeros((num_layers, d_model, hidden_pad), jnp.float32)
    w1 = w1.at[:, :, :hidden_size].set(params["w1"])
    b1 = jnp.zeros((num_layers, 1, hidden_pad), jnp.float32)
    b1 = b1.at[:, :, :hidden_size].set(params["b1"])
    w2 = jnp.zeros((num_layers, hidden_pad, d_model), jnp.float32)
    w2 = w2.at[:, :hidden_size, :].set(params["w2"])

    # lane-dense fc output
    out_cols = _round_up(output_size, 128)
    wfc = jnp.zeros((d_model, out_cols), jnp.float32).at[:, :output_size].set(params["wfc"])
    bfc = jnp.zeros((1, out_cols), jnp.float32).at[:, :output_size].set(params["bfc"])

    # pack every small f32 vector into one slab -> one DMA stream
    width = max(128, hidden_pad, out_cols)
    scal = jnp.zeros((num_layers + 1, 8, width), jnp.float32)
    scal = scal.at[:num_layers, 0, :d_model].set(b_attn[:, 0, :])
    scal = scal.at[:num_layers, 1, :d_model].set(params["ln1w"][:, 0, :])
    scal = scal.at[:num_layers, 2, :d_model].set(params["ln1b"][:, 0, :])
    scal = scal.at[:num_layers, 3, :hidden_pad].set(b1[:, 0, :])
    scal = scal.at[:num_layers, 4, :d_model].set(params["b2"][:, 0, :])
    scal = scal.at[:num_layers, 5, :d_model].set(params["ln2w"][:, 0, :])
    scal = scal.at[:num_layers, 6, :d_model].set(params["ln2b"][:, 0, :])
    scal = scal.at[num_layers, 0, :out_cols].set(bfc[0, :])

    return {
        "w_attn": w_attn.astype(jnp.bfloat16),
        "w1": w1.astype(jnp.bfloat16),
        "w2": w2.astype(jnp.bfloat16),
        "wfc": wfc.astype(jnp.bfloat16),
        "scal": scal,                                      # f32
        "pe": build_positional_encoding(max_len, d_model), # f32, module-style table
    }


# ------------------------------- wrapper -------------------------------------

def _num_batch_splits(batch):
    """One grid step per TensorCore. v5e/v6e have 1 TC -> one step; v7x has 2,
    so split in two only when the batch is big enough to be worth the extra step."""
    splits = 1
    try:
        kind = jax.devices()[0].device_kind.lower()
    except Exception:
        kind = ""
    if "v7" in kind and batch >= 32:
        splits = 2
    # keep per-step tiles to a few hundred rows so activations stay tiny in VMEM
    splits = max(splits, -(-batch // 512))
    return splits


def generator_forward(noisy, condition_vector, prepared, output_size):
    return _generator_forward_jit(noisy, condition_vector, prepared,
                                  output_size, _num_batch_splits(noisy.shape[0]))


@functools.partial(jax.jit, static_argnames=("output_size", "num_splits"))
def _generator_forward_jit(noisy, condition_vector, prepared, output_size, num_splits):
    # glue (concat + PE table slice) stays in JAX.
    src = jnp.concatenate([noisy, condition_vector], axis=1)   # (B, d_model)
    batch, d_model = src.shape
    out_cols = prepared["wfc"].shape[-1]                       # 128-multiple
    num_layers = prepared["w_attn"].shape[0]
    hidden_pad = prepared["w1"].shape[-1]

    # batch tile: multiple of 16 (bf16 sublane packing), one tile per grid step
    tb = _round_up(-(-batch // num_splits), 16)
    padded_batch = tb * num_splits
    if padded_batch != batch:
        src = jnp.pad(src, ((0, padded_batch - batch), (0, 0)))

    pe_table = prepared["pe"]
    assert padded_batch <= pe_table.shape[0], "batch exceeds precomputed PE table (raise max_len)"
    pe = pe_table[:padded_batch]                               # pe row b added to batch row b

    def full_spec(arr):
        nd = arr.ndim
        return pl.BlockSpec(arr.shape, lambda i, _nd=nd: (0,) * _nd)

    weight_args = [prepared[k] for k in ("w_attn", "w1", "w2", "wfc", "scal")]

    in_specs = (
        [pl.BlockSpec((tb, d_model), lambda i: (i, 0)),   # src
         pl.BlockSpec((tb, d_model), lambda i: (i, 0))]   # pe
        + [full_spec(w) for w in weight_args]
    )
    out_spec = pl.BlockSpec((tb, out_cols), lambda i: (i, 0))

    # advisory cost estimate so XLA schedules the surrounding glue sensibly
    flops = 2 * padded_batch * (num_layers * (d_model * d_model + 2 * d_model * hidden_pad)
                                + d_model * out_cols)
    bytes_accessed = ((src.size + pe.size + prepared["scal"].size
                       + padded_batch * out_cols) * 4
                      + sum(prepared[k].size for k in ("w_attn", "w1", "w2", "wfc")) * 2)

    out = pl.pallas_call(
        generator_kernel,
        out_shape=jax.ShapeDtypeStruct((padded_batch, out_cols), jnp.float32),
        grid_spec=pltpu.PrefetchScalarGridSpec(
            num_scalar_prefetch=0,
            grid=(num_splits,),
            in_specs=in_specs,
            out_specs=out_spec,
        ),
        compiler_params=pltpu.CompilerParams(
            dimension_semantics=("parallel",)),
        cost_estimate=pl.CostEstimate(
            flops=flops,
            transcendentals=2 * num_layers * padded_batch,   # rsqrt per LayerNorm row
            bytes_accessed=bytes_accessed),
    )(src, pe, *weight_args)

    out = out[:batch, :output_size]
    # generated_samples.view(batch_size, -1, output_size)
    return out.reshape(batch, -1, output_size)


# --------------------------- pure-JAX references ------------------------------

def reference_forward(noisy, condition_vector, params, output_size, num_heads=2):
    """f32 reference following the PyTorch module (full QKV + explicit softmax)."""
    src = jnp.concatenate([noisy, condition_vector], axis=1)
    batch, d_model = src.shape
    x = src + build_positional_encoding(batch, d_model)
    num_layers = params["wqkv"].shape[0]
    head_dim = d_model // num_heads
    for l in range(num_layers):
        qkv = x @ params["wqkv"][l] + params["bqkv"][l]
        q = qkv[:, :d_model]
        k = qkv[:, d_model:2 * d_model]
        v = qkv[:, 2 * d_model:]
        qh = q.reshape(batch, num_heads, head_dim)
        kh = k.reshape(batch, num_heads, head_dim)
        vh = v.reshape(batch, num_heads, head_dim)
        # seq_len == 1: scores are (1,1) per (batch, head); softmax == 1.0
        scores = jnp.einsum("bhd,bhd->bh", qh, kh)[..., None] / jnp.sqrt(head_dim)
        w = jax.nn.softmax(scores, axis=-1)                    # all ones
        ah = w * vh                                            # == vh
        attn = ah.reshape(batch, d_model) @ params["wo"][l] + params["bo"][l]
        x = _layer_norm(x + attn, params["ln1w"][l], params["ln1b"][l])
        h = jnp.maximum(x @ params["w1"][l] + params["b1"][l], 0.0)
        ff = h @ params["w2"][l] + params["b2"][l]
        x = _layer_norm(x + ff, params["ln2w"][l], params["ln2b"][l])
    out = x @ params["wfc"] + params["bfc"]
    return out.reshape(batch, -1, output_size)


def prepared_reference_forward(noisy, condition_vector, prepared, output_size):
    """Same math / dtypes / packed params as the kernel, in plain JAX."""
    src = jnp.concatenate([noisy, condition_vector], axis=1)
    batch, d_model = src.shape
    x = src + prepared["pe"][:batch]
    num_layers = prepared["w_attn"].shape[0]
    hidden_pad = prepared["w1"].shape[-1]
    out_cols = prepared["wfc"].shape[-1]
    scal = prepared["scal"]
    for l in range(num_layers):
        b_attn = scal[l, 0:1, :d_model]
        ln1w, ln1b = scal[l, 1:2, :d_model], scal[l, 2:3, :d_model]
        b1 = scal[l, 3:4, :hidden_pad]
        b2 = scal[l, 4:5, :d_model]
        ln2w, ln2b = scal[l, 5:6, :d_model], scal[l, 6:7, :d_model]
        attn = jnp.dot(x.astype(jnp.bfloat16), prepared["w_attn"][l],
                       preferred_element_type=jnp.float32) + b_attn
        x = _layer_norm(x + attn, ln1w, ln1b)
        h = jnp.maximum(jnp.dot(x.astype(jnp.bfloat16), prepared["w1"][l],
                                preferred_element_type=jnp.float32) + b1, 0.0)
        ff = jnp.dot(h.astype(jnp.bfloat16), prepared["w2"][l],
                     preferred_element_type=jnp.float32) + b2
        x = _layer_norm(x + ff, ln2w, ln2b)
    bfc = scal[num_layers, 0:1, :out_cols]
    out = jnp.dot(x.astype(jnp.bfloat16), prepared["wfc"],
                  preferred_element_type=jnp.float32) + bfc
    return out[:, :output_size].reshape(batch, -1, output_size)


# ---------------------------------- main -------------------------------------

if __name__ == "__main__":
    # small, module-consistent shapes
    batch = 8
    noisy_size = 16
    condition_size = 16
    d_model = noisy_size + condition_size     # 32
    hidden_size = 64
    output_size = 8
    num_layers = 3

    key = jax.random.PRNGKey(0)
    k_noisy, k_cond, k_params = jax.random.split(key, 3)

    noisy = jax.random.normal(k_noisy, (batch, noisy_size), jnp.float32)
    condition_vector = jax.random.normal(k_cond, (batch, condition_size), jnp.float32)

    params = init_params(k_params, d_model, hidden_size, output_size, num_layers)
    prepared = prepare_params(params)

    out = generator_forward(noisy, condition_vector, prepared, output_size)
    out = jax.block_until_ready(out)
    assert out.shape == (batch, 1, output_size), out.shape

    # Tight structural check vs a plain-JAX forward using the same folded/padded bf16 params.
    ref_prepared = prepared_reference_forward(noisy, condition_vector, prepared, output_size)
    assert jnp.allclose(out, ref_prepared, atol=2e-3, rtol=2e-3), "mismatch vs folded-bf16 reference"

    # Spec check vs the f32 PyTorch-semantics reference (tolerance loosened for bf16 weights).
    ref = reference_forward(noisy, condition_vector, params, output_size)
    assert jnp.allclose(out, ref, atol=5e-2, rtol=5e-2), "mismatch vs f32 module reference"

    # TODO(synk): dropout is treated as identity (inference mode); training-mode
    # dropout masks are not implemented.
    print("KERNEL_OK")
</pallas_src>

<mosaic_0001>
module attributes {stable_mosaic.version = 11 : i64} {
  func.func @generator_kernel(%arg0: i32, %arg1: memref<16x32xf32, #tpu.memory_space<vmem>>, %arg2: memref<16x32xf32, #tpu.memory_space<vmem>>, %arg3: memref<3x32x32xbf16, #tpu.memory_space<vmem>>, %arg4: memref<3x32x128xbf16, #tpu.memory_space<vmem>>, %arg5: memref<3x128x32xbf16, #tpu.memory_space<vmem>>, %arg6: memref<32x128xbf16, #tpu.memory_space<vmem>>, %arg7: memref<4x8x128xf32, #tpu.memory_space<vmem>>, %arg8: memref<16x128xf32, #tpu.memory_space<vmem>>) attributes {dimension_semantics = [#tpu.dimension_semantics<parallel>], iteration_bounds = array<i64: 1>, scalar_prefetch = 0 : i64, scratch_operands = 0 : i64, tpu.core_type = #tpu.core_type<tc>, window_params = [{transform_indices = @transform_0, window_bounds = array<i64: 16, 32>}, {transform_indices = @transform_1, window_bounds = array<i64: 16, 32>}, {pipeline_mode = #tpu.pipeline_mode<synchronous>, transform_indices = @transform_2, window_bounds = array<i64: 3, 32, 32>}, {pipeline_mode = #tpu.pipeline_mode<synchronous>, transform_indices = @transform_3, window_bounds = array<i64: 3, 32, 128>}, {pipeline_mode = #tpu.pipeline_mode<synchronous>, transform_indices = @transform_4, window_bounds = array<i64: 3, 128, 32>}, {pipeline_mode = #tpu.pipeline_mode<synchronous>, transform_indices = @transform_5, window_bounds = array<i64: 32, 128>}, {pipeline_mode = #tpu.pipeline_mode<synchronous>, transform_indices = @transform_6, window_bounds = array<i64: 4, 8, 128>}, {transform_indices = @transform_7, window_bounds = array<i64: 16, 128>}]} {
    %c0 = arith.constant 0 : index
    %c0_0 = arith.constant 0 : index
    %0 = vector.load %arg1[%c0, %c0_0] : memref<16x32xf32, #tpu.memory_space<vmem>>, vector<16x32xf32>
    %c0_1 = arith.constant 0 : index
    %c0_2 = arith.constant 0 : index
    %1 = vector.load %arg2[%c0_1, %c0_2] : memref<16x32xf32, #tpu.memory_space<vmem>>, vector<16x32xf32>
    %2 = arith.addf %0, %1 : vector<16x32xf32>
    %c0_3 = arith.constant 0 : index
    %c0_4 = arith.constant 0 : index
    %c0_5 = arith.constant 0 : index
    %3 = vector.load %arg7[%c0_3, %c0_4, %c0_5] : memref<4x8x128xf32, #tpu.memory_space<vmem>>, vector<1x1x32xf32>
    %4 = vector.shape_cast %3 : vector<1x1x32xf32> to vector<1x32xf32>
    %c0_6 = arith.constant 0 : index
    %c1 = arith.constant 1 : index
    %c0_7 = arith.constant 0 : index
    %5 = vector.load %arg7[%c0_6, %c1, %c0_7] : memref<4x8x128xf32, #tpu.memory_space<vmem>>, vector<1x1x32xf32>
    %6 = vector.shape_cast %5 : vector<1x1x32xf32> to vector<1x32xf32>
    %c0_8 = arith.constant 0 : index
    %c2 = arith.constant 2 : index
    %c0_9 = arith.constant 0 : index
    %7 = vector.load %arg7[%c0_8, %c2, %c0_9] : memref<4x8x128xf32, #tpu.memory_space<vmem>>, vector<1x1x32xf32>
    %8 = vector.shape_cast %7 : vector<1x1x32xf32> to vector<1x32xf32>
    %c0_10 = arith.constant 0 : index
    %c3 = arith.constant 3 : index
    %c0_11 = arith.constant 0 : index
    %9 = vector.load %arg7[%c0_10, %c3, %c0_11] : memref<4x8x128xf32, #tpu.memory_space<vmem>>, vector<1x1x128xf32>
    %10 = vector.shape_cast %9 : vector<1x1x128xf32> to vector<1x128xf32>
    %c0_12 = arith.constant 0 : index
    %c4 = arith.constant 4 : index
    %c0_13 = arith.constant 0 : index
    %11 = vector.load %arg7[%c0_12, %c4, %c0_13] : memref<4x8x128xf32, #tpu.memory_space<vmem>>, vector<1x1x32xf32>
    %12 = vector.shape_cast %11 : vector<1x1x32xf32> to vector<1x32xf32>
    %c0_14 = arith.constant 0 : index
    %c5 = arith.constant 5 : index
    %c0_15 = arith.constant 0 : index
    %13 = vector.load %arg7[%c0_14, %c5, %c0_15] : memref<4x8x128xf32, #tpu.memory_space<vmem>>, vector<1x1x32xf32>
    %14 = vector.shape_cast %13 : vector<1x1x32xf32> to vector<1x32xf32>
    %c0_16 = arith.constant 0 : index
    %c6 = arith.constant 6 : index
    %c0_17 = arith.constant 0 : index
    %15 = vector.load %arg7[%c0_16, %c6, %c0_17] : memref<4x8x128xf32, #tpu.memory_space<vmem>>, vector<1x1x32xf32>
    %16 = vector.shape_cast %15 : vector<1x1x32xf32> to vector<1x32xf32>
    %17 = arith.truncf %2 : vector<16x32xf32> to vector<16x32xbf16>
    %c0_18 = arith.constant 0 : index
    %c0_19 = arith.constant 0 : index
    %c0_20 = arith.constant 0 : index
    %18 = vector.load %arg3[%c0_18, %c0_19, %c0_20] : memref<3x32x32xbf16, #tpu.memory_space<vmem>>, vector<1x32x32xbf16>
    %19 = vector.shape_cast %18 : vector<1x32x32xbf16> to vector<32x32xbf16>
    %cst = arith.constant dense<0.000000e+00> : vector<16x32xf32>
    %20 = tpu.matmul %17, %19, %cst {dimension_numbers = #tpu.dot_dimension_numbers<[1], [0], [0], [1], [0, 0, 1, 1], [], []>} : vector<16x32xbf16>, vector<32x32xbf16>, vector<16x32xf32> -> vector<16x32xf32>
    %21 = vector.broadcast %4 : vector<1x32xf32> to vector<16x32xf32>
    %22 = arith.addf %20, %21 : vector<16x32xf32>
    %23 = arith.addf %2, %22 : vector<16x32xf32>
    %cst_21 = arith.constant dense<0.000000e+00> : vector<16xf32>
    %24 = vector.multi_reduction <add>, %23, %cst_21 [1] : vector<16x32xf32> to vector<16xf32>
    %25 = vector.shape_cast %24 : vector<16xf32> to vector<16x1xf32>
    %cst_22 = arith.constant 3.200000e+01 : f32
    %26 = vector.broadcast %cst_22 : f32 to vector<16x1xf32>
    %27 = arith.divf %25, %26 : vector<16x1xf32>
    %28 = vector.broadcast %27 : vector<16x1xf32> to vector<16x32xf32>
    %29 = arith.subf %23, %28 : vector<16x32xf32>
    %30 = vector.broadcast %27 : vector<16x1xf32> to vector<16x32xf32>
    %31 = arith.subf %23, %30 : vector<16x32xf32>
    %32 = arith.mulf %29, %31 : vector<16x32xf32>
    %cst_23 = arith.constant dense<0.000000e+00> : vector<16xf32>
    %33 = vector.multi_reduction <add>, %32, %cst_23 [1] : vector<16x32xf32> to vector<16xf32>
    %34 = vector.shape_cast %33 : vector<16xf32> to vector<16x1xf32>
    %cst_24 = arith.constant 3.200000e+01 : f32
    %35 = vector.broadcast %cst_24 : f32 to vector<16x1xf32>
    %36 = arith.divf %34, %35 : vector<16x1xf32>
    %37 = vector.broadcast %27 : vector<16x1xf32> to vector<16x32xf32>
    %38 = arith.subf %23, %37 : vector<16x32xf32>
    %cst_25 = arith.constant 9.99999974E-6 : f32
    %39 = vector.broadcast %cst_25 : f32 to vector<16x1xf32>
    %40 = arith.addf %36, %39 : vector<16x1xf32>
    %41 = math.rsqrt %40 : vector<16x1xf32>
    %42 = vector.broadcast %41 : vector<16x1xf32> to vector<16x32xf32>
    %43 = arith.mulf %38, %42 : vector<16x32xf32>
    %44 = vector.broadcast %6 : vector<1x32xf32> to vector<16x32xf32>
    %45 = arith.mulf %43, %44 : vector<16x32xf32>
    %46 = vector.broadcast %8 : vector<1x32xf32> to vector<16x32xf32>
    %47 = arith.addf %45, %46 : vector<16x32xf32>
    %48 = arith.truncf %47 : vector<16x32xf32> to vector<16x32xbf16>
    %c0_26 = arith.constant 0 : index
    %c0_27 = arith.constant 0 : index
    %c0_28 = arith.constant 0 : index
    %49 = vector.load %arg4[%c0_26, %c0_27, %c0_28] : memref<3x32x128xbf16, #tpu.memory_space<vmem>>, vector<1x32x128xbf16>
    %50 = vector.shape_cast %49 : vector<1x32x128xbf16> to vector<32x128xbf16>
    %cst_29 = arith.constant dense<0.000000e+00> : vector<16x128xf32>
    %51 = tpu.matmul %48, %50, %cst_29 {dimension_numbers = #tpu.dot_dimension_numbers<[1], [0], [0], [1], [0, 0, 1, 1], [], []>} : vector<16x32xbf16>, vector<32x128xbf16>, vector<16x128xf32> -> vector<16x128xf32>
    %52 = vector.broadcast %10 : vector<1x128xf32> to vector<16x128xf32>
    %53 = arith.addf %51, %52 : vector<16x128xf32>
    %cst_30 = arith.constant 0.000000e+00 : f32
    %54 = vector.broadcast %cst_30 : f32 to vector<16x128xf32>
    %55 = arith.maximumf %53, %54 : vector<16x128xf32>
    %56 = arith.truncf %55 : vector<16x128xf32> to vector<16x128xbf16>
    %c0_31 = arith.constant 0 : index
    %c0_32 = arith.constant 0 : index
    %c0_33 = arith.constant 0 : index
    %57 = vector.load %arg5[%c0_31, %c0_32, %c0_33] : memref<3x128x32xbf16, #tpu.memory_space<vmem>>, vector<1x128x32xbf16>
    %58 = vector.shape_cast %57 : vector<1x128x32xbf16> to vector<128x32xbf16>
    %cst_34 = arith.constant dense<0.000000e+00> : vector<16x32xf32>
    %59 = tpu.matmul %56, %58, %cst_34 {dimension_numbers = #tpu.dot_dimension_numbers<[1], [0], [0], [1], [0, 0, 1, 1], [], []>} : vector<16x128xbf16>, vector<128x32xbf16>, vector<16x32xf32> -> vector<16x32xf32>
    %60 = vector.broadcast %12 : vector<1x32xf32> to vector<16x32xf32>
    %61 = arith.addf %59, %60 : vector<16x32xf32>
    %62 = arith.addf %47, %61 : vector<16x32xf32>
    %cst_35 = arith.constant dense<0.000000e+00> : vector<16xf32>
    %63 = vector.multi_reduction <add>, %62, %cst_35 [1] : vector<16x32xf32> to vector<16xf32>
    %64 = vector.shape_cast %63 : vector<16xf32> to vector<16x1xf32>
    %cst_36 = arith.constant 3.200000e+01 : f32
    %65 = vector.broadcast %cst_36 : f32 to vector<16x1xf32>
    %66 = arith.divf %64, %65 : vector<16x1xf32>
    %67 = vector.broadcast %66 : vector<16x1xf32> to vector<16x32xf32>
    %68 = arith.subf %62, %67 : vector<16x32xf32>
    %69 = vector.broadcast %66 : vector<16x1xf32> to vector<16x32xf32>
    %70 = arith.subf %62, %69 : vector<16x32xf32>
    %71 = arith.mulf %68, %70 : vector<16x32xf32>
    %cst_37 = arith.constant dense<0.000000e+00> : vector<16xf32>
    %72 = vector.multi_reduction <add>, %71, %cst_37 [1] : vector<16x32xf32> to vector<16xf32>
    %73 = vector.shape_cast %72 : vector<16xf32> to vector<16x1xf32>
    %cst_38 = arith.constant 3.200000e+01 : f32
    %74 = vector.broadcast %cst_38 : f32 to vector<16x1xf32>
    %75 = arith.divf %73, %74 : vector<16x1xf32>
    %76 = vector.broadcast %66 : vector<16x1xf32> to vector<16x32xf32>
    %77 = arith.subf %62, %76 : vector<16x32xf32>
    %cst_39 = arith.constant 9.99999974E-6 : f32
    %78 = vector.broadcast %cst_39 : f32 to vector<16x1xf32>
    %79 = arith.addf %75, %78 : vector<16x1xf32>
    %80 = math.rsqrt %79 : vector<16x1xf32>
    %81 = vector.broadcast %80 : vector<16x1xf32> to vector<16x32xf32>
    %82 = arith.mulf %77, %81 : vector<16x32xf32>
    %83 = vector.broadcast %14 : vector<1x32xf32> to vector<16x32xf32>
    %84 = arith.mulf %82, %83 : vector<16x32xf32>
    %85 = vector.broadcast %16 : vector<1x32xf32> to vector<16x32xf32>
    %86 = arith.addf %84, %85 : vector<16x32xf32>
    %c1_40 = arith.constant 1 : index
    %c0_41 = arith.constant 0 : index
    %c0_42 = arith.constant 0 : index
    %87 = vector.load %arg7[%c1_40, %c0_41, %c0_42] : memref<4x8x128xf32, #tpu.memory_space<vmem>>, vector<1x1x32xf32>
    %88 = vector.shape_cast %87 : vector<1x1x32xf32> to vector<1x32xf32>
    %c1_43 = arith.constant 1 : index
    %c1_44 = arith.constant 1 : index
    %c0_45 = arith.constant 0 : index
    %89 = vector.load %arg7[%c1_43, %c1_44, %c0_45] : memref<4x8x128xf32, #tpu.memory_space<vmem>>, vector<1x1x32xf32>
    %90 = vector.shape_cast %89 : vector<1x1x32xf32> to vector<1x32xf32>
    %c1_46 = arith.constant 1 : index
    %c2_47 = arith.constant 2 : index
    %c0_48 = arith.constant 0 : index
    %91 = vector.load %arg7[%c1_46, %c2_47, %c0_48] : memref<4x8x128xf32, #tpu.memory_space<vmem>>, vector<1x1x32xf32>
    %92 = vector.shape_cast %91 : vector<1x1x32xf32> to vector<1x32xf32>
    %c1_49 = arith.constant 1 : index
    %c3_50 = arith.constant 3 : index
    %c0_51 = arith.constant 0 : index
    %93 = vector.load %arg7[%c1_49, %c3_50, %c0_51] : memref<4x8x128xf32, #tpu.memory_space<vmem>>, vector<1x1x128xf32>
    %94 = vector.shape_cast %93 : vector<1x1x128xf32> to vector<1x128xf32>
    %c1_52 = arith.constant 1 : index
    %c4_53 = arith.constant 4 : index
    %c0_54 = arith.constant 0 : index
    %95 = vector.load %arg7[%c1_52, %c4_53, %c0_54] : memref<4x8x128xf32, #tpu.memory_space<vmem>>, vector<1x1x32xf32>
    %96 = vector.shape_cast %95 : vector<1x1x32xf32> to vector<1x32xf32>
    %c1_55 = arith.constant 1 : index
    %c5_56 = arith.constant 5 : index
    %c0_57 = arith.constant 0 : index
    %97 = vector.load %arg7[%c1_55, %c5_56, %c0_57] : memref<4x8x128xf32, #tpu.memory_space<vmem>>, vector<1x1x32xf32>
    %98 = vector.shape_cast %97 : vector<1x1x32xf32> to vector<1x32xf32>
    %c1_58 = arith.constant 1 : index
    %c6_59 = arith.constant 6 : index
    %c0_60 = arith.constant 0 : index
    %99 = vector.load %arg7[%c1_58, %c6_59, %c0_60] : memref<4x8x128xf32, #tpu.memory_space<vmem>>, vector<1x1x32xf32>
    %100 = vector.shape_cast %99 : vector<1x1x32xf32> to vector<1x32xf32>
    %101 = arith.truncf %86 : vector<16x32xf32> to vector<16x32xbf16>
    %c1_61 = arith.constant 1 : index
    %c0_62 = arith.constant 0 : index
    %c0_63 = arith.constant 0 : index
    %102 = vector.load %arg3[%c1_61, %c0_62, %c0_63] : memref<3x32x32xbf16, #tpu.memory_space<vmem>>, vector<1x32x32xbf16>
    %103 = vector.shape_cast %102 : vector<1x32x32xbf16> to vector<32x32xbf16>
    %cst_64 = arith.constant dense<0.000000e+00> : vector<16x32xf32>
    %104 = tpu.matmul %101, %103, %cst_64 {dimension_numbers = #tpu.dot_dimension_numbers<[1], [0], [0], [1], [0, 0, 1, 1], [], []>} : vector<16x32xbf16>, vector<32x32xbf16>, vector<16x32xf32> -> vector<16x32xf32>
    %105 = vector.broadcast %88 : vector<1x32xf32> to vector<16x32xf32>
    %106 = arith.addf %104, %105 : vector<16x32xf32>
    %107 = arith.addf %86, %106 : vector<16x32xf32>
    %cst_65 = arith.constant dense<0.000000e+00> : vector<16xf32>
    %108 = vector.multi_reduction <add>, %107, %cst_65 [1] : vector<16x32xf32> to vector<16xf32>
    %109 = vector.shape_cast %108 : vector<16xf32> to vector<16x1xf32>
    %cst_66 = arith.constant 3.200000e+01 : f32
    %110 = vector.broadcast %cst_66 : f32 to vector<16x1xf32>
    %111 = arith.divf %109, %110 : vector<16x1xf32>
    %112 = vector.broadcast %111 : vector<16x1xf32> to vector<16x32xf32>
    %113 = arith.subf %107, %112 : vector<16x32xf32>
    %114 = vector.broadcast %111 : vector<16x1xf32> to vector<16x32xf32>
    %115 = arith.subf %107, %114 : vector<16x32xf32>
    %116 = arith.mulf %113, %115 : vector<16x32xf32>
    %cst_67 = arith.constant dense<0.000000e+00> : vector<16xf32>
    %117 = vector.multi_reduction <add>, %116, %cst_67 [1] : vector<16x32xf32> to vector<16xf32>
    %118 = vector.shape_cast %117 : vector<16xf32> to vector<16x1xf32>
    %cst_68 = arith.constant 3.200000e+01 : f32
    %119 = vector.broadcast %cst_68 : f32 to vector<16x1xf32>
    %120 = arith.divf %118, %119 : vector<16x1xf32>
    %121 = vector.broadcast %111 : vector<16x1xf32> to vector<16x32xf32>
    %122 = arith.subf %107, %121 : vector<16x32xf32>
    %cst_69 = arith.constant 9.99999974E-6 : f32
    %123 = vector.broadcast %cst_69 : f32 to vector<16x1xf32>
    %124 = arith.addf %120, %123 : vector<16x1xf32>
    %125 = math.rsqrt %124 : vector<16x1xf32>
    %126 = vector.broadcast %125 : vector<16x1xf32> to vector<16x32xf32>
    %127 = arith.mulf %122, %126 : vector<16x32xf32>
    %128 = vector.broadcast %90 : vector<1x32xf32> to vector<16x32xf32>
    %129 = arith.mulf %127, %128 : vector<16x32xf32>
    %130 = vector.broadcast %92 : vector<1x32xf32> to vector<16x32xf32>
    %131 = arith.addf %129, %130 : vector<16x32xf32>
    %132 = arith.truncf %131 : vector<16x32xf32> to vector<16x32xbf16>
    %c1_70 = arith.constant 1 : index
    %c0_71 = arith.constant 0 : index
    %c0_72 = arith.constant 0 : index
    %133 = vector.load %arg4[%c1_70, %c0_71, %c0_72] : memref<3x32x128xbf16, #tpu.memory_space<vmem>>, vector<1x32x128xbf16>
    %134 = vector.shape_cast %133 : vector<1x32x128xbf16> to vector<32x128xbf16>
    %cst_73 = arith.constant dense<0.000000e+00> : vector<16x128xf32>
    %135 = tpu.matmul %132, %134, %cst_73 {dimension_numbers = #tpu.dot_dimension_numbers<[1], [0], [0], [1], [0, 0, 1, 1], [], []>} : vector<16x32xbf16>, vector<32x128xbf16>, vector<16x128xf32> -> vector<16x128xf32>
    %136 = vector.broadcast %94 : vector<1x128xf32> to vector<16x128xf32>
    %137 = arith.addf %135, %136 : vector<16x128xf32>
    %cst_74 = arith.constant 0.000000e+00 : f32
    %138 = vector.broadcast %cst_74 : f32 to vector<16x128xf32>
    %139 = arith.maximumf %137, %138 : vector<16x128xf32>
    %140 = arith.truncf %139 : vector<16x128xf32> to vector<16x128xbf16>
    %c1_75 = arith.constant 1 : index
    %c0_76 = arith.constant 0 : index
    %c0_77 = arith.constant 0 : index
    %141 = vector.load %arg5[%c1_75, %c0_76, %c0_77] : memref<3x128x32xbf16, #tpu.memory_space<vmem>>, vector<1x128x32xbf16>
    %142 = vector.shape_cast %141 : vector<1x128x32xbf16> to vector<128x32xbf16>
    %cst_78 = arith.constant dense<0.000000e+00> : vector<16x32xf32>
    %143 = tpu.matmul %140, %142, %cst_78 {dimension_numbers = #tpu.dot_dimension_numbers<[1], [0], [0], [1], [0, 0, 1, 1], [], []>} : vector<16x128xbf16>, vector<128x32xbf16>, vector<16x32xf32> -> vector<16x32xf32>
    %144 = vector.broadcast %96 : vector<1x32xf32> to vector<16x32xf32>
    %145 = arith.addf %143, %144 : vector<16x32xf32>
    %146 = arith.addf %131, %145 : vector<16x32xf32>
    %cst_79 = arith.constant dense<0.000000e+00> : vector<16xf32>
    %147 = vector.multi_reduction <add>, %146, %cst_79 [1] : vector<16x32xf32> to vector<16xf32>
    %148 = vector.shape_cast %147 : vector<16xf32> to vector<16x1xf32>
    %cst_80 = arith.constant 3.200000e+01 : f32
    %149 = vector.broadcast %cst_80 : f32 to vector<16x1xf32>
    %150 = arith.divf %148, %149 : vector<16x1xf32>
    %151 = vector.broadcast %150 : vector<16x1xf32> to vector<16x32xf32>
    %152 = arith.subf %146, %151 : vector<16x32xf32>
    %153 = vector.broadcast %150 : vector<16x1xf32> to vector<16x32xf32>
    %154 = arith.subf %146, %153 : vector<16x32xf32>
    %155 = arith.mulf %152, %154 : vector<16x32xf32>
    %cst_81 = arith.constant dense<0.000000e+00> : vector<16xf32>
    %156 = vector.multi_reduction <add>, %155, %cst_81 [1] : vector<16x32xf32> to vector<16xf32>
    %157 = vector.shape_cast %156 : vector<16xf32> to vector<16x1xf32>
    %cst_82 = arith.constant 3.200000e+01 : f32
    %158 = vector.broadcast %cst_82 : f32 to vector<16x1xf32>
    %159 = arith.divf %157, %158 : vector<16x1xf32>
    %160 = vector.broadcast %150 : vector<16x1xf32> to vector<16x32xf32>
    %161 = arith.subf %146, %160 : vector<16x32xf32>
    %cst_83 = arith.constant 9.99999974E-6 : f32
    %162 = vector.broadcast %cst_83 : f32 to vector<16x1xf32>
    %163 = arith.addf %159, %162 : vector<16x1xf32>
    %164 = math.rsqrt %163 : vector<16x1xf32>
    %165 = vector.broadcast %164 : vector<16x1xf32> to vector<16x32xf32>
    %166 = arith.mulf %161, %165 : vector<16x32xf32>
    %167 = vector.broadcast %98 : vector<1x32xf32> to vector<16x32xf32>
    %168 = arith.mulf %166, %167 : vector<16x32xf32>
    %169 = vector.broadcast %100 : vector<1x32xf32> to vector<16x32xf32>
    %170 = arith.addf %168, %169 : vector<16x32xf32>
    %c2_84 = arith.constant 2 : index
    %c0_85 = arith.constant 0 : index
    %c0_86 = arith.constant 0 : index
    %171 = vector.load %arg7[%c2_84, %c0_85, %c0_86] : memref<4x8x128xf32, #tpu.memory_space<vmem>>, vector<1x1x32xf32>
    %172 = vector.shape_cast %171 : vector<1x1x32xf32> to vector<1x32xf32>
    %c2_87 = arith.constant 2 : index
    %c1_88 = arith.constant 1 : index
    %c0_89 = arith.constant 0 : index
    %173 = vector.load %arg7[%c2_87, %c1_88, %c0_89] : memref<4x8x128xf32, #tpu.memory_space<vmem>>, vector<1x1x32xf32>
    %174 = vector.shape_cast %173 : vector<1x1x32xf32> to vector<1x32xf32>
    %c2_90 = arith.constant 2 : index
    %c2_91 = arith.constant 2 : index
    %c0_92 = arith.constant 0 : index
    %175 = vector.load %arg7[%c2_90, %c2_91, %c0_92] : memref<4x8x128xf32, #tpu.memory_space<vmem>>, vector<1x1x32xf32>
    %176 = vector.shape_cast %175 : vector<1x1x32xf32> to vector<1x32xf32>
    %c2_93 = arith.constant 2 : index
    %c3_94 = arith.constant 3 : index
    %c0_95 = arith.constant 0 : index
    %177 = vector.load %arg7[%c2_93, %c3_94, %c0_95] : memref<4x8x128xf32, #tpu.memory_space<vmem>>, vector<1x1x128xf32>
    %178 = vector.shape_cast %177 : vector<1x1x128xf32> to vector<1x128xf32>
    %c2_96 = arith.constant 2 : index
    %c4_97 = arith.constant 4 : index
    %c0_98 = arith.constant 0 : index
    %179 = vector.load %arg7[%c2_96, %c4_97, %c0_98] : memref<4x8x128xf32, #tpu.memory_space<vmem>>, vector<1x1x32xf32>
    %180 = vector.shape_cast %179 : vector<1x1x32xf32> to vector<1x32xf32>
    %c2_99 = arith.constant 2 : index
    %c5_100 = arith.constant 5 : index
    %c0_101 = arith.constant 0 : index
    %181 = vector.load %arg7[%c2_99, %c5_100, %c0_101] : memref<4x8x128xf32, #tpu.memory_space<vmem>>, vector<1x1x32xf32>
    %182 = vector.shape_cast %181 : vector<1x1x32xf32> to vector<1x32xf32>
    %c2_102 = arith.constant 2 : index
    %c6_103 = arith.constant 6 : index
    %c0_104 = arith.constant 0 : index
    %183 = vector.load %arg7[%c2_102, %c6_103, %c0_104] : memref<4x8x128xf32, #tpu.memory_space<vmem>>, vector<1x1x32xf32>
    %184 = vector.shape_cast %183 : vector<1x1x32xf32> to vector<1x32xf32>
    %185 = arith.truncf %170 : vector<16x32xf32> to vector<16x32xbf16>
    %c2_105 = arith.constant 2 : index
    %c0_106 = arith.constant 0 : index
    %c0_107 = arith.constant 0 : index
    %186 = vector.load %arg3[%c2_105, %c0_106, %c0_107] : memref<3x32x32xbf16, #tpu.memory_space<vmem>>, vector<1x32x32xbf16>
    %187 = vector.shape_cast %186 : vector<1x32x32xbf16> to vector<32x32xbf16>
    %cst_108 = arith.constant dense<0.000000e+00> : vector<16x32xf32>
    %188 = tpu.matmul %185, %187, %cst_108 {dimension_numbers = #tpu.dot_dimension_numbers<[1], [0], [0], [1], [0, 0, 1, 1], [], []>} : vector<16x32xbf16>, vector<32x32xbf16>, vector<16x32xf32> -> vector<16x32xf32>
    %189 = vector.broadcast %172 : vector<1x32xf32> to vector<16x32xf32>
    %190 = arith.addf %188, %189 : vector<16x32xf32>
    %191 = arith.addf %170, %190 : vector<16x32xf32>
    %cst_109 = arith.constant dense<0.000000e+00> : vector<16xf32>
    %192 = vector.multi_reduction <add>, %191, %cst_109 [1] : vector<16x32xf32> to vector<16xf32>
    %193 = vector.shape_cast %192 : vector<16xf32> to vector<16x1xf32>
    %cst_110 = arith.constant 3.200000e+01 : f32
    %194 = vector.broadcast %cst_110 : f32 to vector<16x1xf32>
    %195 = arith.divf %193, %194 : vector<16x1xf32>
    %196 = vector.broadcast %195 : vector<16x1xf32> to vector<16x32xf32>
    %197 = arith.subf %191, %196 : vector<16x32xf32>
    %198 = vector.broadcast %195 : vector<16x1xf32> to vector<16x32xf32>
    %199 = arith.subf %191, %198 : vector<16x32xf32>
    %200 = arith.mulf %197, %199 : vector<16x32xf32>
    %cst_111 = arith.constant dense<0.000000e+00> : vector<16xf32>
    %201 = vector.multi_reduction <add>, %200, %cst_111 [1] : vector<16x32xf32> to vector<16xf32>
    %202 = vector.shape_cast %201 : vector<16xf32> to vector<16x1xf32>
    %cst_112 = arith.constant 3.200000e+01 : f32
    %203 = vector.broadcast %cst_112 : f32 to vector<16x1xf32>
    %204 = arith.divf %202, %203 : vector<16x1xf32>
    %205 = vector.broadcast %195 : vector<16x1xf32> to vector<16x32xf32>
    %206 = arith.subf %191, %205 : vector<16x32xf32>
    %cst_113 = arith.constant 9.99999974E-6 : f32
    %207 = vector.broadcast %cst_113 : f32 to vector<16x1xf32>
    %208 = arith.addf %204, %207 : vector<16x1xf32>
    %209 = math.rsqrt %208 : vector<16x1xf32>
    %210 = vector.broadcast %209 : vector<16x1xf32> to vector<16x32xf32>
    %211 = arith.mulf %206, %210 : vector<16x32xf32>
    %212 = vector.broadcast %174 : vector<1x32xf32> to vector<16x32xf32>
    %213 = arith.mulf %211, %212 : vector<16x32xf32>
    %214 = vector.broadcast %176 : vector<1x32xf32> to vector<16x32xf32>
    %215 = arith.addf %213, %214 : vector<16x32xf32>
    %216 = arith.truncf %215 : vector<16x32xf32> to vector<16x32xbf16>
    %c2_114 = arith.constant 2 : index
    %c0_115 = arith.constant 0 : index
    %c0_116 = arith.constant 0 : index
    %217 = vector.load %arg4[%c2_114, %c0_115, %c0_116] : memref<3x32x128xbf16, #tpu.memory_space<vmem>>, vector<1x32x128xbf16>
    %218 = vector.shape_cast %217 : vector<1x32x128xbf16> to vector<32x128xbf16>
    %cst_117 = arith.constant dense<0.000000e+00> : vector<16x128xf32>
    %219 = tpu.matmul %216, %218, %cst_117 {dimension_numbers = #tpu.dot_dimension_numbers<[1], [0], [0], [1], [0, 0, 1, 1], [], []>} : vector<16x32xbf16>, vector<32x128xbf16>, vector<16x128xf32> -> vector<16x128xf32>
    %220 = vector.broadcast %178 : vector<1x128xf32> to vector<16x128xf32>
    %221 = arith.addf %219, %220 : vector<16x128xf32>
    %cst_118 = arith.constant 0.000000e+00 : f32
    %222 = vector.broadcast %cst_118 : f32 to vector<16x128xf32>
    %223 = arith.maximumf %221, %222 : vector<16x128xf32>
    %224 = arith.truncf %223 : vector<16x128xf32> to vector<16x128xbf16>
    %c2_119 = arith.constant 2 : index
    %c0_120 = arith.constant 0 : index
    %c0_121 = arith.constant 0 : index
    %225 = vector.load %arg5[%c2_119, %c0_120, %c0_121] : memref<3x128x32xbf16, #tpu.memory_space<vmem>>, vector<1x128x32xbf16>
    %226 = vector.shape_cast %225 : vector<1x128x32xbf16> to vector<128x32xbf16>
    %cst_122 = arith.constant dense<0.000000e+00> : vector<16x32xf32>
    %227 = tpu.matmul %224, %226, %cst_122 {dimension_numbers = #tpu.dot_dimension_numbers<[1], [0], [0], [1], [0, 0, 1, 1], [], []>} : vector<16x128xbf16>, vector<128x32xbf16>, vector<16x32xf32> -> vector<16x32xf32>
    %228 = vector.broadcast %180 : vector<1x32xf32> to vector<16x32xf32>
    %229 = arith.addf %227, %228 : vector<16x32xf32>
    %230 = arith.addf %215, %229 : vector<16x32xf32>
    %cst_123 = arith.constant dense<0.000000e+00> : vector<16xf32>
    %231 = vector.multi_reduction <add>, %230, %cst_123 [1] : vector<16x32xf32> to vector<16xf32>
    %232 = vector.shape_cast %231 : vector<16xf32> to vector<16x1xf32>
    %cst_124 = arith.constant 3.200000e+01 : f32
    %233 = vector.broadcast %cst_124 : f32 to vector<16x1xf32>
    %234 = arith.divf %232, %233 : vector<16x1xf32>
    %235 = vector.broadcast %234 : vector<16x1xf32> to vector<16x32xf32>
    %236 = arith.subf %230, %235 : vector<16x32xf32>
    %237 = vector.broadcast %234 : vector<16x1xf32> to vector<16x32xf32>
    %238 = arith.subf %230, %237 : vector<16x32xf32>
    %239 = arith.mulf %236, %238 : vector<16x32xf32>
    %cst_125 = arith.constant dense<0.000000e+00> : vector<16xf32>
    %240 = vector.multi_reduction <add>, %239, %cst_125 [1] : vector<16x32xf32> to vector<16xf32>
    %241 = vector.shape_cast %240 : vector<16xf32> to vector<16x1xf32>
    %cst_126 = arith.constant 3.200000e+01 : f32
    %242 = vector.broadcast %cst_126 : f32 to vector<16x1xf32>
    %243 = arith.divf %241, %242 : vector<16x1xf32>
    %244 = vector.broadcast %234 : vector<16x1xf32> to vector<16x32xf32>
    %245 = arith.subf %230, %244 : vector<16x32xf32>
    %cst_127 = arith.constant 9.99999974E-6 : f32
    %246 = vector.broadcast %cst_127 : f32 to vector<16x1xf32>
    %247 = arith.addf %243, %246 : vector<16x1xf32>
    %248 = math.rsqrt %247 : vector<16x1xf32>
    %249 = vector.broadcast %248 : vector<16x1xf32> to vector<16x32xf32>
    %250 = arith.mulf %245, %249 : vector<16x32xf32>
    %251 = vector.broadcast %182 : vector<1x32xf32> to vector<16x32xf32>
    %252 = arith.mulf %250, %251 : vector<16x32xf32>
    %253 = vector.broadcast %184 : vector<1x32xf32> to vector<16x32xf32>
    %254 = arith.addf %252, %253 : vector<16x32xf32>
    %c3_128 = arith.constant 3 : index
    %c0_129 = arith.constant 0 : index
    %c0_130 = arith.constant 0 : index
    %255 = vector.load %arg7[%c3_128, %c0_129, %c0_130] : memref<4x8x128xf32, #tpu.memory_space<vmem>>, vector<1x1x128xf32>
    %256 = vector.shape_cast %255 : vector<1x1x128xf32> to vector<1x128xf32>
    %257 = arith.truncf %254 : vector<16x32xf32> to vector<16x32xbf16>
    %c0_131 = arith.constant 0 : index
    %c0_132 = arith.constant 0 : index
    %258 = vector.load %arg6[%c0_131, %c0_132] : memref<32x128xbf16, #tpu.memory_space<vmem>>, vector<32x128xbf16>
    %cst_133 = arith.constant dense<0.000000e+00> : vector<16x128xf32>
    %259 = tpu.matmul %257, %258, %cst_133 {dimension_numbers = #tpu.dot_dimension_numbers<[1], [0], [0], [1], [0, 0, 1, 1], [], []>} : vector<16x32xbf16>, vector<32x128xbf16>, vector<16x128xf32> -> vector<16x128xf32>
    %260 = vector.broadcast %256 : vector<1x128xf32> to vector<16x128xf32>
    %261 = arith.addf %259, %260 : vector<16x128xf32>
    %c0_134 = arith.constant 0 : index
    %c0_135 = arith.constant 0 : index
    %262 = vector.load %arg8[%c0_134, %c0_135] : memref<16x128xf32, #tpu.memory_space<vmem>>, vector<16x128xf32>
    tpu.vector_store %arg8[%c0_134, %c0_135], %261 {strides = array<i32>} : memref<16x128xf32, #tpu.memory_space<vmem>>, vector<16x128xf32>,
    return
  }
  func.func @transform_0(%arg0: i32) -> (i32, i32) {
    %c0_i32 = arith.constant 0 : i32
    %c0_i32_0 = arith.constant 0 : i32
    return %arg0, %c0_i32 : i32, i32
  }
  func.func @transform_1(%arg0: i32) -> (i32, i32) {
    %c0_i32 = arith.constant 0 : i32
    %c0_i32_0 = arith.constant 0 : i32
    return %arg0, %c0_i32 : i32, i32
  }
  func.func @transform_2(%arg0: i32) -> (i32, i32, i32) {
    %c0_i32 = arith.constant 0 : i32
    %c0_i32_0 = arith.constant 0 : i32
    %c0_i32_1 = arith.constant 0 : i32
    %c0_i32_2 = arith.constant 0 : i32
    return %c0_i32, %c0_i32_0, %c0_i32_1 : i32, i32, i32
  }
  func.func @transform_3(%arg0: i32) -> (i32, i32, i32) {
    %c0_i32 = arith.constant 0 : i32
    %c0_i32_0 = arith.constant 0 : i32
    %c0_i32_1 = arith.constant 0 : i32
    %c0_i32_2 = arith.constant 0 : i32
    return %c0_i32, %c0_i32_0, %c0_i32_1 : i32, i32, i32
  }
  func.func @transform_4(%arg0: i32) -> (i32, i32, i32) {
    %c0_i32 = arith.constant 0 : i32
    %c0_i32_0 = arith.constant 0 : i32
    %c0_i32_1 = arith.constant 0 : i32
    %c0_i32_2 = arith.constant 0 : i32
    return %c0_i32, %c0_i32_0, %c0_i32_1 : i32, i32, i32
  }
  func.func @transform_5(%arg0: i32) -> (i32, i32) {
    %c0_i32 = arith.constant 0 : i32
    %c0_i32_0 = arith.constant 0 : i32
    %c0_i32_1 = arith.constant 0 : i32
    return %c0_i32, %c0_i32_0 : i32, i32
  }
  func.func @transform_6(%arg0: i32) -> (i32, i32, i32) {
    %c0_i32 = arith.constant 0 : i32
    %c0_i32_0 = arith.constant 0 : i32
    %c0_i32_1 = arith.constant 0 : i32
    %c0_i32_2 = arith.constant 0 : i32
    return %c0_i32, %c0_i32_0, %c0_i32_1 : i32, i32, i32
  }
  func.func @transform_7(%arg0: i32) -> (i32, i32) {
    %c0_i32 = arith.constant 0 : i32
    %c0_i32_0 = arith.constant 0 : i32
    return %arg0, %c0_i32 : i32, i32
  }
}

</mosaic_0001>

<llo_original>
// kernel: _generator_forward_jit.1
$region0: #{_generator_forward_jit.1}
  #allocation0 [shape = 'u32[]', space=smem, size = 0x4, offset = 0x4, fixed_abs, tag = 'smem constant byte address 0x4 - core index']
  #allocation1 [shape = 'u32[72,128]{1,0:T(1,128)}', space=vmem, size = 0x9000, scoped, tag = 'internal scratch']
  %s0 = inlined_call_operand.vmem [shape: f32[16,32], index: 0, kind: input, shape index: {}]
  %s1 = inlined_call_operand.vmem [shape: f32[16,32], index: 1, kind: input, shape index: {}]
  %s2 = inlined_call_operand.vmem [shape: bf16[3,32,32], index: 2, kind: input, shape index: {}]
  %s3 = inlined_call_operand.vmem [shape: bf16[3,32,128], index: 3, kind: input, shape index: {}]
  %s4 = inlined_call_operand.vmem [shape: bf16[3,128,32], index: 4, kind: input, shape index: {}]
  %s5 = inlined_call_operand.vmem [shape: bf16[32,128], index: 5, kind: input, shape index: {}]
  %s6 = inlined_call_operand.vmem [shape: f32[4,8,128], index: 6, kind: input, shape index: {}]
  %s7 = inlined_call_operand.vmem [shape: f32[16,128], index: 7, kind: output, shape index: {}]
  %s8 = sld [smem:[#allocation0]]
  $region38: #{_generator_forward_jit.1} parent=0
    _
  %s10 = ssub.s32 1, %s8
  %s11 = scalar_select 0, %s10, %s8
  // Predicated region
  $region2: #{_generator_forward_jit.1} parent=0 // pred_check
    _
  $region3: #{_generator_forward_jit.1} parent=0 // pred_check_branch
    %13 = sbr.rel (0) target = $region5
  $region4: #{_generator_forward_jit.1} parent=0 // pred_region
    _
  $region5: #{_generator_forward_jit.1} parent=0 // pred_fallthru
    _
  // Predicated region
  $region6: #{_generator_forward_jit.1} parent=0 // pred_check
    _
  $region7: #{_generator_forward_jit.1} parent=0 // pred_check_branch
    %15 = sbr.rel (0) target = $region9
  $region8: #{_generator_forward_jit.1} parent=0 // pred_region
    _
  $region9: #{_generator_forward_jit.1} parent=0 // pred_fallthru
    _
  // Predicated region
  $region10: #{_generator_forward_jit.1} parent=0 // pred_check
    _
  $region11: #{_generator_forward_jit.1} parent=0 // pred_check_branch
    %17 = sbr.rel (0) target = $region13
  $region12: #{_generator_forward_jit.1} parent=0 // pred_region
    _
  $region13: #{_generator_forward_jit.1} parent=0 // pred_fallthru
    _
  // Predicated region
  $region14: #{_generator_forward_jit.1} parent=0 // pred_check
    _
  $region15: #{_generator_forward_jit.1} parent=0 // pred_check_branch
    %19 = sbr.rel (0) target = $region17
  $region16: #{_generator_forward_jit.1} parent=0 // pred_region
    _
  $region17: #{_generator_forward_jit.1} parent=0 // pred_fallthru
    _
  // Predicated region
  $region18: #{_generator_forward_jit.1} parent=0 // pred_check
    _
  $region19: #{_generator_forward_jit.1} parent=0 // pred_check_branch
    %21 = sbr.rel (0) target = $region21
  $region20: #{_generator_forward_jit.1} parent=0 // pred_region
    _
  $region21: #{_generator_forward_jit.1} parent=0 // pred_fallthru
    _
  // Predicated region
  $region22: #{_generator_forward_jit.1} parent=0 // pred_check
    _
  $region23: #{_generator_forward_jit.1} parent=0 // pred_check_branch
    %23 = sbr.rel (0) target = $region25
  $region24: #{_generator_forward_jit.1} parent=0 // pred_region
    _
  $region25: #{_generator_forward_jit.1} parent=0 // pred_fallthru
    _
  // Predicated region
  $region26: #{_generator_forward_jit.1} parent=0 // pred_check
    _
  $region27: #{_generator_forward_jit.1} parent=0 // pred_check_branch
    %25 = sbr.rel (0) target = $region29
  $region28: #{_generator_forward_jit.1} parent=0 // pred_region
    _
  $region29: #{_generator_forward_jit.1} parent=0 // pred_fallthru
    _
  %v27 = vld [vmem:[%s0] sm:$0xff]
  %v28 = vld [vmem:[%s0 + $0x8] sm:$0xff]
  %v29 = vld [vmem:[%s1] sm:$0xff]
  %v30 = vld [vmem:[%s1 + $0x8] sm:$0xff]
  %v31 = vadd.f32 %v27, %v29
  %v32 = vadd.f32 %v28, %v30
  %v33 = vld [vmem:[%s6] sm:$0x1]
  %v34 = vld [vmem:[%s6 + $0x1] sm:$0x1]
  %v35 = vld [vmem:[%s6 + $0x2] sm:$0x1]
  %v36 = vld [vmem:[%s6 + $0x3] sm:$0x1]
  %v37 = vld [vmem:[%s6 + $0x4] sm:$0x1]
  %v38 = vld [vmem:[%s6 + $0x5] sm:$0x1]
  %v39 = vld [vmem:[%s6 + $0x6] sm:$0x1]
  %v40 = vpack.c.bf16 %v32, %v31
  %v41 = vld [vmem:[%s2] sm:$0xf]
  %v42 = vld [vmem:[%s2 + $0x4] sm:$0xf]
  %v43 = vld [vmem:[%s2 + $0x8] sm:$0xf]
  %v44 = vld [vmem:[%s2 + $0xc] sm:$0xf]
  %v45 = vperm.slane %v33, 0
  %v50 = vunpack.c.l.b16 %v41
  %v51 = vunpack.c.l.b16 %v42
  %v52 = vunpack.c.l.b16 %v43
  %v53 = vunpack.c.l.b16 %v44
  %v54 = vpack.c.b16 %v51, %v50
  %v55 = vpack.c.b16 %v53, %v52
  %vm58 = vcmask 261120
  %v60 = vsel %vm58, %v40, 0
  %62 = vmatpush.bf16.msra.mxu0 0
  %63 = vmatpush.bf16.msra.mxu0 0
  %64 = vmatpush.bf16.msra.mxu0 0
  %65 = vmatpush.bf16.msra.mxu0 0
  %66 = vmatpush.bf16.msra.mxu0 0
  %67 = vmatpush.bf16.msra.mxu0 0
  %68 = vmatpush.bf16.msra.mxu0 %v55
  %69 = vmatpush.bf16.msra.mxu0 %v54
  %70 = vmatmul.bf16.gmra.mxu0 %v60
  %v71 = vpop.f32.mrf.mxu0
  %v72 = vadd.f32 %v45, %v71
  %v73 = vpop.f32.mrf.mxu0
  %v74 = vadd.f32 %v45, %v73
  %75 = vdwg.mxu0
  %v76 = vadd.f32 %v31, %v72
  %v77 = vadd.f32 %v32, %v74
  %v78 = vsel %vm58, %v76, 0.0
  %79 = vadd.xlane.f32.xlu0 %v78
  %v80 = vpop.xlane.xlu0 %79
  %v81 = vsel %vm58, %v77, 0.0
  %82 = vadd.xlane.f32.xlu0 %v81
  %v83 = vpop.xlane.xlu0 %82
  %v84 = vrcp.pop 32.0
  %v85 = vmul.f32 32.0, %v84
  %v86 = vsub.f32 1.0, %v85
  %v87 = vmul.f32 %v84, %v86
  %v88 = vadd.f32 %v84, %v87
  %vm89 = vweird.f32 %v84
  %v90 = vsel %vm89, %v84, %v88
  %v91 = vmul.f32 %v80, %v90
  %v92 = vmul.f32 %v83, %v90
  %v93 = vsub.f32 %v76, %v91
  %v94 = vsub.f32 %v77, %v92
  %v95 = vmul.f32 %v93, %v93
  %v96 = vmul.f32 %v94, %v94
  %v97 = vsel %vm58, %v95, 0.0
  %98 = vadd.xlane.f32.xlu0 %v97
  %v99 = vpop.xlane.xlu0 %98
  %v100 = vsel %vm58, %v96, 0.0
  %101 = vadd.xlane.f32.xlu0 %v100
  %v102 = vpop.xlane.xlu0 %101
  %v103 = vmul.f32 %v99, %v90
  %v104 = vmul.f32 %v102, %v90
  %v105 = vadd.f32 %v103, 1e-05
  %v106 = vadd.f32 %v104, 1e-05
  %v107 = vrsqrt.pop %v105
  %v108 = vmul.f32 %v107, %v105
  %v109 = vmul.f32 %v108, %v107
  %v110 = vmul.f32 0.5, %v109
  %v111 = vsub.f32 1.5, %v110
  %v112 = vmul.f32 %v107, %v111
  %vm113 = vweird.f32 %v105
  %vm114 = vweird.f32 %v107
  %vm115 = vmor %vm113, %vm114
  %v116 = vsel %vm115, %v107, %v112
  %v117 = vrsqrt.pop %v106
  %v118 = vmul.f32 %v117, %v106
  %v119 = vmul.f32 %v118, %v117
  %v120 = vmul.f32 0.5, %v119
  %v121 = vsub.f32 1.5, %v120
  %v122 = vmul.f32 %v117, %v121
  %vm123 = vweird.f32 %v106
  %vm124 = vweird.f32 %v117
  %vm125 = vmor %vm123, %vm124
  %v126 = vsel %vm125, %v117, %v122
  %v127 = vmul.f32 %v93, %v116
  %v128 = vmul.f32 %v94, %v126
  %v129 = vperm.slane %v34, 0
  %v130 = vmul.f32 %v127, %v129
  %v131 = vmul.f32 %v128, %v129
  %v132 = vperm.slane %v35, 0
  %v133 = vadd.f32 %v130, %v132
  %v134 = vadd.f32 %v131, %v132
  %v135 = vpack.c.bf16 %v134, %v133
  %v136 = vld [vmem:[%s3] sm:$0xf]
  %v137 = vld [vmem:[%s3 + $0x4] sm:$0xf]
  %v138 = vld [vmem:[%s3 + $0x8] sm:$0xf]
  %v139 = vld [vmem:[%s3 + $0xc] sm:$0xf]
  %v140 = vperm.slane %v36, 0
  %v145 = vunpack.c.l.b16 %v136
  %v146 = vunpack.c.l.b16 %v137
  %v147 = vunpack.c.l.b16 %v138
  %v148 = vunpack.c.l.b16 %v139
  %v149 = vpack.c.b16 %v146, %v145
  %v150 = vpack.c.b16 %v148, %v147
  %v154 = vsel %vm58, %v135, 0
  %156 = vmatpush.bf16.msra.mxu0 0
  %157 = vmatpush.bf16.msra.mxu0 0
  %158 = vmatpush.bf16.msra.mxu0 0
  %159 = vmatpush.bf16.msra.mxu0 0
  %160 = vmatpush.bf16.msra.mxu0 0
  %161 = vmatpush.bf16.msra.mxu0 0
  %162 = vmatpush.bf16.msra.mxu0 %v150
  %163 = vmatpush.bf16.msra.mxu0 %v149
  %164 = vmatmul.bf16.gmra.mxu0 %v154
  %v165 = vpop.f32.mrf.mxu0
  %v166 = vadd.f32 %v140, %v165
  %v167 = vpop.f32.mrf.mxu0
  %v168 = vadd.f32 %v140, %v167
  %169 = vdwg.mxu0
  %v170 = vmax.f32 %v166, 0.0
  %v171 = vmax.f32 %v168, 0.0
  %v172 = vpack.c.bf16 %v171, %v170
  %v173 = vld [vmem:[%s4] sm:$0xf]
  %v174 = vld [vmem:[%s4 + $0x4] sm:$0xf]
  %v175 = vld [vmem:[%s4 + $0x8] sm:$0xf]
  %v176 = vld [vmem:[%s4 + $0xc] sm:$0xf]
  %v177 = vld [vmem:[%s4 + $0x10] sm:$0xf]
  %v178 = vld [vmem:[%s4 + $0x14] sm:$0xf]
  %v179 = vld [vmem:[%s4 + $0x18] sm:$0xf]
  %v180 = vld [vmem:[%s4 + $0x1c] sm:$0xf]
  %v181 = vld [vmem:[%s4 + $0x20] sm:$0xf]
  %v182 = vld [vmem:[%s4 + $0x24] sm:$0xf]
  %v183 = vld [vmem:[%s4 + $0x28] sm:$0xf]
  %v184 = vld [vmem:[%s4 + $0x2c] sm:$0xf]
  %v185 = vld [vmem:[%s4 + $0x30] sm:$0xf]
  %v186 = vld [vmem:[%s4 + $0x34] sm:$0xf]
  %v187 = vld [vmem:[%s4 + $0x38] sm:$0xf]
  %v188 = vld [vmem:[%s4 + $0x3c] sm:$0xf]
  %v189 = vperm.slane %v37, 0
  %v206 = vunpack.c.l.b16 %v173
  %v207 = vunpack.c.l.b16 %v174
  %v208 = vunpack.c.l.b16 %v175
  %v209 = vunpack.c.l.b16 %v176
  %v210 = vunpack.c.l.b16 %v177
  %v211 = vunpack.c.l.b16 %v178
  %v212 = vunpack.c.l.b16 %v179
  %v213 = vunpack.c.l.b16 %v180
  %v214 = vunpack.c.l.b16 %v181
  %v215 = vunpack.c.l.b16 %v182
  %v216 = vunpack.c.l.b16 %v183
  %v217 = vunpack.c.l.b16 %v184
  %v218 = vunpack.c.l.b16 %v185
  %v219 = vunpack.c.l.b16 %v186
  %v220 = vunpack.c.l.b16 %v187
  %v221 = vunpack.c.l.b16 %v188
  %v222 = vpack.c.b16 %v207, %v206
  %v223 = vpack.c.b16 %v209, %v208
  %v224 = vpack.c.b16 %v211, %v210
  %v225 = vpack.c.b16 %v213, %v212
  %v226 = vpack.c.b16 %v215, %v214
  %v227 = vpack.c.b16 %v217, %v216
  %v228 = vpack.c.b16 %v219, %v218
  %v229 = vpack.c.b16 %v221, %v220
  %238 = vmatpush.bf16.msra.mxu0 %v229
  %239 = vmatpush.bf16.msra.mxu0 %v228
  %240 = vmatpush.bf16.msra.mxu0 %v227
  %241 = vmatpush.bf16.msra.mxu0 %v226
  %242 = vmatpush.bf16.msra.mxu0 %v225
  %243 = vmatpush.bf16.msra.mxu0 %v224
  %244 = vmatpush.bf16.msra.mxu0 %v223
  %245 = vmatpush.bf16.msra.mxu0 %v222
  %246 = vmatmul.bf16.gmra.mxu0 %v172
  %v247 = vpop.f32.mrf.mxu0
  %v248 = vadd.f32 %v189, %v247
  %v249 = vpop.f32.mrf.mxu0
  %v250 = vadd.f32 %v189, %v249
  %251 = vdwg.mxu0
  %v252 = vadd.f32 %v133, %v248
  %v253 = vadd.f32 %v134, %v250
  %v254 = vsel %vm58, %v252, 0.0
  %255 = vadd.xlane.f32.xlu0 %v254
  %v256 = vpop.xlane.xlu0 %255
  %v257 = vsel %vm58, %v253, 0.0
  %258 = vadd.xlane.f32.xlu0 %v257
  %v259 = vpop.xlane.xlu0 %258
  %v260 = vmul.f32 %v256, %v90
  %v261 = vmul.f32 %v259, %v90
  %v262 = vsub.f32 %v252, %v260
  %v263 = vsub.f32 %v253, %v261
  %v264 = vmul.f32 %v262, %v262
  %v265 = vmul.f32 %v263, %v263
  %v266 = vsel %vm58, %v264, 0.0
  %267 = vadd.xlane.f32.xlu0 %v266
  %v268 = vpop.xlane.xlu0 %267
  %v269 = vsel %vm58, %v265, 0.0
  %270 = vadd.xlane.f32.xlu0 %v269
  %v271 = vpop.xlane.xlu0 %270
  %v272 = vmul.f32 %v268, %v90
  %v273 = vmul.f32 %v271, %v90
  %v274 = vadd.f32 %v272, 1e-05
  %v275 = vadd.f32 %v273, 1e-05
  %v276 = vrsqrt.pop %v274
  %v277 = vmul.f32 %v276, %v274
  %v278 = vmul.f32 %v277, %v276
  %v279 = vmul.f32 0.5, %v278
  %v280 = vsub.f32 1.5, %v279
  %v281 = vmul.f32 %v276, %v280
  %vm282 = vweird.f32 %v274
  %vm283 = vweird.f32 %v276
  %vm284 = vmor %vm282, %vm283
  %v285 = vsel %vm284, %v276, %v281
  %v286 = vrsqrt.pop %v275
  %v287 = vmul.f32 %v286, %v275
  %v288 = vmul.f32 %v287, %v286
  %v289 = vmul.f32 0.5, %v288
  %v290 = vsub.f32 1.5, %v289
  %v291 = vmul.f32 %v286, %v290
  %vm292 = vweird.f32 %v275
  %vm293 = vweird.f32 %v286
  %vm294 = vmor %vm292, %vm293
  %v295 = vsel %vm294, %v286, %v291
  %v296 = vmul.f32 %v262, %v285
  %v297 = vmul.f32 %v263, %v295
  %v298 = vperm.slane %v38, 0
  %v299 = vmul.f32 %v296, %v298
  %v300 = vmul.f32 %v297, %v298
  %v301 = vperm.slane %v39, 0
  %v302 = vadd.f32 %v299, %v301
  %v303 = vadd.f32 %v300, %v301
  %s304 = scalar_lea.vmem %s6, 8
  %v305 = vld [vmem:[%s304] sm:$0x1]
  %v306 = vld [vmem:[%s304 + $0x1] sm:$0x1]
  %v307 = vld [vmem:[%s304 + $0x2] sm:$0x1]
  %v308 = vld [vmem:[%s304 + $0x3] sm:$0x1]
  %v309 = vld [vmem:[%s304 + $0x4] sm:$0x1]
  %v310 = vld [vmem:[%s304 + $0x5] sm:$0x1]
  %v311 = vld [vmem:[%s304 + $0x6] sm:$0x1]
  %v312 = vpack.c.bf16 %v303, %v302
  %s313 = scalar_lea.vmem %s2, 16
  %v314 = vld [vmem:[%s313] sm:$0xf]
  %v315 = vld [vmem:[%s313 + $0x4] sm:$0xf]
  %v316 = vld [vmem:[%s313 + $0x8] sm:$0xf]
  %v317 = vld [vmem:[%s313 + $0xc] sm:$0xf]
  %v318 = vperm.slane %v305, 0
  %v323 = vunpack.c.l.b16 %v314
  %v324 = vunpack.c.l.b16 %v315
  %v325 = vunpack.c.l.b16 %v316
  %v326 = vunpack.c.l.b16 %v317
  %v327 = vpack.c.b16 %v324, %v323
  %v328 = vpack.c.b16 %v326, %v325
  %v332 = vsel %vm58, %v312, 0
  %334 = vmatpush.bf16.msra.mxu0 0
  %335 = vmatpush.bf16.msra.mxu0 0
  %336 = vmatpush.bf16.msra.mxu0 0
  %337 = vmatpush.bf16.msra.mxu0 0
  %338 = vmatpush.bf16.msra.mxu0 0
  %339 = vmatpush.bf16.msra.mxu0 0
  %340 = vmatpush.bf16.msra.mxu0 %v328
  %341 = vmatpush.bf16.msra.mxu0 %v327
  %342 = vmatmul.bf16.gmra.mxu0 %v332
  %v343 = vpop.f32.mrf.mxu0
  %v344 = vadd.f32 %v318, %v343
  %v345 = vpop.f32.mrf.mxu0
  %v346 = vadd.f32 %v318, %v345
  %347 = vdwg.mxu0
  %v348 = vadd.f32 %v302, %v344
  %v349 = vadd.f32 %v303, %v346
  %v350 = vsel %vm58, %v348, 0.0
  %351 = vadd.xlane.f32.xlu0 %v350
  %v352 = vpop.xlane.xlu0 %351
  %v353 = vsel %vm58, %v349, 0.0
  %354 = vadd.xlane.f32.xlu0 %v353
  %v355 = vpop.xlane.xlu0 %354
  %v356 = vmul.f32 %v352, %v90
  %v357 = vmul.f32 %v355, %v90
  %v358 = vsub.f32 %v348, %v356
  %v359 = vsub.f32 %v349, %v357
  %v360 = vmul.f32 %v358, %v358
  %v361 = vmul.f32 %v359, %v359
  %v362 = vsel %vm58, %v360, 0.0
  %363 = vadd.xlane.f32.xlu0 %v362
  %v364 = vpop.xlane.xlu0 %363
  %v365 = vsel %vm58, %v361, 0.0
  %366 = vadd.xlane.f32.xlu0 %v365
  %v367 = vpop.xlane.xlu0 %366
  %v368 = vmul.f32 %v364, %v90
  %v369 = vmul.f32 %v367, %v90
  %v370 = vadd.f32 %v368, 1e-05
  %v371 = vadd.f32 %v369, 1e-05
  %v372 = vrsqrt.pop %v370
  %v373 = vmul.f32 %v372, %v370
  %v374 = vmul.f32 %v373, %v372
  %v375 = vmul.f32 0.5, %v374
  %v376 = vsub.f32 1.5, %v375
  %v377 = vmul.f32 %v372, %v376
  %vm378 = vweird.f32 %v370
  %vm379 = vweird.f32 %v372
  %vm380 = vmor %vm378, %vm379
  %v381 = vsel %vm380, %v372, %v377
  %v382 = vrsqrt.pop %v371
  %v383 = vmul.f32 %v382, %v371
  %v384 = vmul.f32 %v383, %v382
  %v385 = vmul.f32 0.5, %v384
  %v386 = vsub.f32 1.5, %v385
  %v387 = vmul.f32 %v382, %v386
  %vm388 = vweird.f32 %v371
  %vm389 = vweird.f32 %v382
  %vm390 = vmor %vm388, %vm389
  %v391 = vsel %vm390, %v382, %v387
  %v392 = vmul.f32 %v358, %v381
  %v393 = vmul.f32 %v359, %v391
  %v394 = vperm.slane %v306, 0
  %v395 = vmul.f32 %v392, %v394
  %v396 = vmul.f32 %v393, %v394
  %v397 = vperm.slane %v307, 0
  %v398 = vadd.f32 %v395, %v397
  %v399 = vadd.f32 %v396, %v397
  %v400 = vpack.c.bf16 %v399, %v398
  %s401 = scalar_lea.vmem %s3, 16
  %v402 = vld [vmem:[%s401] sm:$0xf]
  %v403 = vld [vmem:[%s401 + $0x4] sm:$0xf]
  %v404 = vld [vmem:[%s401 + $0x8] sm:$0xf]
  %v405 = vld [vmem:[%s401 + $0xc] sm:$0xf]
  %v406 = vperm.slane %v308, 0
  %v411 = vunpack.c.l.b16 %v402
  %v412 = vunpack.c.l.b16 %v403
  %v413 = vunpack.c.l.b16 %v404
  %v414 = vunpack.c.l.b16 %v405
  %v415 = vpack.c.b16 %v412, %v411
  %v416 = vpack.c.b16 %v414, %v413
  %v420 = vsel %vm58, %v400, 0
  %422 = vmatpush.bf16.msra.mxu0 0
  %423 = vmatpush.bf16.msra.mxu0 0
  %424 = vmatpush.bf16.msra.mxu0 0
  %425 = vmatpush.bf16.msra.mxu0 0
  %426 = vmatpush.bf16.msra.mxu0 0
  %427 = vmatpush.bf16.msra.mxu0 0
  %428 = vmatpush.bf16.msra.mxu0 %v416
  %429 = vmatpush.bf16.msra.mxu0 %v415
  %430 = vmatmul.bf16.gmra.mxu0 %v420
  %v431 = vpop.f32.mrf.mxu0
  %v432 = vadd.f32 %v406, %v431
  %v433 = vpop.f32.mrf.mxu0
  %v434 = vadd.f32 %v406, %v433
  %435 = vdwg.mxu0
  %v436 = vmax.f32 %v432, 0.0
  %v437 = vmax.f32 %v434, 0.0
  %v438 = vpack.c.bf16 %v437, %v436
  %s439 = scalar_lea.vmem %s4, 64
  %v440 = vld [vmem:[%s439] sm:$0xf]
  %v441 = vld [vmem:[%s439 + $0x4] sm:$0xf]
  %v442 = vld [vmem:[%s439 + $0x8] sm:$0xf]
  %v443 = vld [vmem:[%s439 + $0xc] sm:$0xf]
  %v444 = vld [vmem:[%s439 + $0x10] sm:$0xf]
  %v445 = vld [vmem:[%s439 + $0x14] sm:$0xf]
  %v446 = vld [vmem:[%s439 + $0x18] sm:$0xf]
  %v447 = vld [vmem:[%s439 + $0x1c] sm:$0xf]
  %v448 = vld [vmem:[%s439 + $0x20] sm:$0xf]
  %v449 = vld [vmem:[%s439 + $0x24] sm:$0xf]
  %v450 = vld [vmem:[%s439 + $0x28] sm:$0xf]
  %v451 = vld [vmem:[%s439 + $0x2c] sm:$0xf]
  %v452 = vld [vmem:[%s439 + $0x30] sm:$0xf]
  %v453 = vld [vmem:[%s439 + $0x34] sm:$0xf]
  %v454 = vld [vmem:[%s439 + $0x38] sm:$0xf]
  %v455 = vld [vmem:[%s439 + $0x3c] sm:$0xf]
  %v456 = vperm.slane %v309, 0
  %v473 = vunpack.c.l.b16 %v440
  %v474 = vunpack.c.l.b16 %v441
  %v475 = vunpack.c.l.b16 %v442
  %v476 = vunpack.c.l.b16 %v443
  %v477 = vunpack.c.l.b16 %v444
  %v478 = vunpack.c.l.b16 %v445
  %v479 = vunpack.c.l.b16 %v446
  %v480 = vunpack.c.l.b16 %v447
  %v481 = vunpack.c.l.b16 %v448
  %v482 = vunpack.c.l.b16 %v449
  %v483 = vunpack.c.l.b16 %v450
  %v484 = vunpack.c.l.b16 %v451
  %v485 = vunpack.c.l.b16 %v452
  %v486 = vunpack.c.l.b16 %v453
  %v487 = vunpack.c.l.b16 %v454
  %v488 = vunpack.c.l.b16 %v455
  %v489 = vpack.c.b16 %v474, %v473
  %v490 = vpack.c.b16 %v476, %v475
  %v491 = vpack.c.b16 %v478, %v477
  %v492 = vpack.c.b16 %v480, %v479
  %v493 = vpack.c.b16 %v482, %v481
  %v494 = vpack.c.b16 %v484, %v483
  %v495 = vpack.c.b16 %v486, %v485
  %v496 = vpack.c.b16 %v488, %v487
  %505 = vmatpush.bf16.msra.mxu0 %v496
  %506 = vmatpush.bf16.msra.mxu0 %v495
  %507 = vmatpush.bf16.msra.mxu0 %v494
  %508 = vmatpush.bf16.msra.mxu0 %v493
  %509 = vmatpush.bf16.msra.mxu0 %v492
  %510 = vmatpush.bf16.msra.mxu0 %v491
  %511 = vmatpush.bf16.msra.mxu0 %v490
  %512 = vmatpush.bf16.msra.mxu0 %v489
  %513 = vmatmul.bf16.gmra.mxu0 %v438
  %v514 = vpop.f32.mrf.mxu0
  %v515 = vadd.f32 %v456, %v514
  %v516 = vpop.f32.mrf.mxu0
  %v517 = vadd.f32 %v456, %v516
  %518 = vdwg.mxu0
  %v519 = vadd.f32 %v398, %v515
  %v520 = vadd.f32 %v399, %v517
  %v521 = vsel %vm58, %v519, 0.0
  %522 = vadd.xlane.f32.xlu0 %v521
  %v523 = vpop.xlane.xlu0 %522
  %v524 = vsel %vm58, %v520, 0.0
  %525 = vadd.xlane.f32.xlu0 %v524
  %v526 = vpop.xlane.xlu0 %525
  %v527 = vmul.f32 %v523, %v90
  %v528 = vmul.f32 %v526, %v90
  %v529 = vsub.f32 %v519, %v527
  %v530 = vsub.f32 %v520, %v528
  %v531 = vmul.f32 %v529, %v529
  %v532 = vmul.f32 %v530, %v530
  %v533 = vsel %vm58, %v531, 0.0
  %534 = vadd.xlane.f32.xlu0 %v533
  %v535 = vpop.xlane.xlu0 %534
  %v536 = vsel %vm58, %v532, 0.0
  %537 = vadd.xlane.f32.xlu0 %v536
  %v538 = vpop.xlane.xlu0 %537
  %v539 = vmul.f32 %v535, %v90
  %v540 = vmul.f32 %v538, %v90
  %v541 = vadd.f32 %v539, 1e-05
  %v542 = vadd.f32 %v540, 1e-05
  %v543 = vrsqrt.pop %v541
  %v544 = vmul.f32 %v543, %v541
  %v545 = vmul.f32 %v544, %v543
  %v546 = vmul.f32 0.5, %v545
  %v547 = vsub.f32 1.5, %v546
  %v548 = vmul.f32 %v543, %v547
  %vm549 = vweird.f32 %v541
  %vm550 = vweird.f32 %v543
  %vm551 = vmor %vm549, %vm550
  %v552 = vsel %vm551, %v543, %v548
  %v553 = vrsqrt.pop %v542
  %v554 = vmul.f32 %v553, %v542
  %v555 = vmul.f32 %v554, %v553
  %v556 = vmul.f32 0.5, %v555
  %v557 = vsub.f32 1.5, %v556
  %v558 = vmul.f32 %v553, %v557
  %vm559 = vweird.f32 %v542
  %vm560 = vweird.f32 %v553
  %vm561 = vmor %vm559, %vm560
  %v562 = vsel %vm561, %v553, %v558
  %v563 = vmul.f32 %v529, %v552
  %v564 = vmul.f32 %v530, %v562
  %v565 = vperm.slane %v310, 0
  %v566 = vmul.f32 %v563, %v565
  %v567 = vmul.f32 %v564, %v565
  %v568 = vperm.slane %v311, 0
  %v569 = vadd.f32 %v566, %v568
  %v570 = vadd.f32 %v567, %v568
  %s571 = scalar_lea.vmem %s6, 16
  %v572 = vld [vmem:[%s571] sm:$0x1]
  %v573 = vld [vmem:[%s571 + $0x1] sm:$0x1]
  %v574 = vld [vmem:[%s571 + $0x2] sm:$0x1]
  %v575 = vld [vmem:[%s571 + $0x3] sm:$0x1]
  %v576 = vld [vmem:[%s571 + $0x4] sm:$0x1]
  %v577 = vld [vmem:[%s571 + $0x5] sm:$0x1]
  %v578 = vld [vmem:[%s571 + $0x6] sm:$0x1]
  %v579 = vpack.c.bf16 %v570, %v569
  %s580 = scalar_lea.vmem %s2, 32
  %v581 = vld [vmem:[%s580] sm:$0xf]
  %v582 = vld [vmem:[%s580 + $0x4] sm:$0xf]
  %v583 = vld [vmem:[%s580 + $0x8] sm:$0xf]
  %v584 = vld [vmem:[%s580 + $0xc] sm:$0xf]
  %v585 = vperm.slane %v572, 0
  %v590 = vunpack.c.l.b16 %v581
  %v591 = vunpack.c.l.b16 %v582
  %v592 = vunpack.c.l.b16 %v583
  %v593 = vunpack.c.l.b16 %v584
  %v594 = vpack.c.b16 %v591, %v590
  %v595 = vpack.c.b16 %v593, %v592
  %v599 = vsel %vm58, %v579, 0
  %601 = vmatpush.bf16.msra.mxu0 0
  %602 = vmatpush.bf16.msra.mxu0 0
  %603 = vmatpush.bf16.msra.mxu0 0
  %604 = vmatpush.bf16.msra.mxu0 0
  %605 = vmatpush.bf16.msra.mxu0 0
  %606 = vmatpush.bf16.msra.mxu0 0
  %607 = vmatpush.bf16.msra.mxu0 %v595
  %608 = vmatpush.bf16.msra.mxu0 %v594
  %609 = vmatmul.bf16.gmra.mxu0 %v599
  %v610 = vpop.f32.mrf.mxu0
  %v611 = vadd.f32 %v585, %v610
  %v612 = vpop.f32.mrf.mxu0
  %v613 = vadd.f32 %v585, %v612
  %614 = vdwg.mxu0
  %v615 = vadd.f32 %v569, %v611
  %v616 = vadd.f32 %v570, %v613
  %v617 = vsel %vm58, %v615, 0.0
  %618 = vadd.xlane.f32.xlu0 %v617
  %v619 = vpop.xlane.xlu0 %618
  %v620 = vsel %vm58, %v616, 0.0
  %621 = vadd.xlane.f32.xlu0 %v620
  %v622 = vpop.xlane.xlu0 %621
  %v623 = vmul.f32 %v619, %v90
  %v624 = vmul.f32 %v622, %v90
  %v625 = vsub.f32 %v615, %v623
  %v626 = vsub.f32 %v616, %v624
  %v627 = vmul.f32 %v625, %v625
  %v628 = vmul.f32 %v626, %v626
  %v629 = vsel %vm58, %v627, 0.0
  %630 = vadd.xlane.f32.xlu0 %v629
  %v631 = vpop.xlane.xlu0 %630
  %v632 = vsel %vm58, %v628, 0.0
  %633 = vadd.xlane.f32.xlu0 %v632
  %v634 = vpop.xlane.xlu0 %633
  %v635 = vmul.f32 %v631, %v90
  %v636 = vmul.f32 %v634, %v90
  %v637 = vadd.f32 %v635, 1e-05
  %v638 = vadd.f32 %v636, 1e-05
  %v639 = vrsqrt.pop %v637
  %v640 = vmul.f32 %v639, %v637
  %v641 = vmul.f32 %v640, %v639
  %v642 = vmul.f32 0.5, %v641
  %v643 = vsub.f32 1.5, %v642
  %v644 = vmul.f32 %v639, %v643
  %vm645 = vweird.f32 %v637
  %vm646 = vweird.f32 %v639
  %vm647 = vmor %vm645, %vm646
  %v648 = vsel %vm647, %v639, %v644
  %v649 = vrsqrt.pop %v638
  %v650 = vmul.f32 %v649, %v638
  %v651 = vmul.f32 %v650, %v649
  %v652 = vmul.f32 0.5, %v651
  %v653 = vsub.f32 1.5, %v652
  %v654 = vmul.f32 %v649, %v653
  %vm655 = vweird.f32 %v638
  %vm656 = vweird.f32 %v649
  %vm657 = vmor %vm655, %vm656
  %v658 = vsel %vm657, %v649, %v654
  %v659 = vmul.f32 %v625, %v648
  %v660 = vmul.f32 %v626, %v658
  %v661 = vperm.slane %v573, 0
  %v662 = vmul.f32 %v659, %v661
  %v663 = vmul.f32 %v660, %v661
  %v664 = vperm.slane %v574, 0
  %v665 = vadd.f32 %v662, %v664
  %v666 = vadd.f32 %v663, %v664
  %v667 = vpack.c.bf16 %v666, %v665
  %s668 = scalar_lea.vmem %s3, 32
  %v669 = vld [vmem:[%s668] sm:$0xf]
  %v670 = vld [vmem:[%s668 + $0x4] sm:$0xf]
  %v671 = vld [vmem:[%s668 + $0x8] sm:$0xf]
  %v672 = vld [vmem:[%s668 + $0xc] sm:$0xf]
  %v673 = vperm.slane %v575, 0
  %v678 = vunpack.c.l.b16 %v669
  %v679 = vunpack.c.l.b16 %v670
  %v680 = vunpack.c.l.b16 %v671
  %v681 = vunpack.c.l.b16 %v672
  %v682 = vpack.c.b16 %v679, %v678
  %v683 = vpack.c.b16 %v681, %v680
  %v687 = vsel %vm58, %v667, 0
  %689 = vmatpush.bf16.msra.mxu0 0
  %690 = vmatpush.bf16.msra.mxu0 0
  %691 = vmatpush.bf16.msra.mxu0 0
  %692 = vmatpush.bf16.msra.mxu0 0
  %693 = vmatpush.bf16.msra.mxu0 0
  %694 = vmatpush.bf16.msra.mxu0 0
  %695 = vmatpush.bf16.msra.mxu0 %v683
  %696 = vmatpush.bf16.msra.mxu0 %v682
  %697 = vmatmul.bf16.gmra.mxu0 %v687
  %v698 = vpop.f32.mrf.mxu0
  %v699 = vadd.f32 %v673, %v698
  %v700 = vpop.f32.mrf.mxu0
  %v701 = vadd.f32 %v673, %v700
  %702 = vdwg.mxu0
  %v703 = vmax.f32 %v699, 0.0
  %v704 = vmax.f32 %v701, 0.0
  %v705 = vpack.c.bf16 %v704, %v703
  %s706 = scalar_lea.vmem %s4, 128
  %v707 = vld [vmem:[%s706] sm:$0xf]
  %v708 = vld [vmem:[%s706 + $0x4] sm:$0xf]
  %v709 = vld [vmem:[%s706 + $0x8] sm:$0xf]
  %v710 = vld [vmem:[%s706 + $0xc] sm:$0xf]
  %v711 = vld [vmem:[%s706 + $0x10] sm:$0xf]
  %v712 = vld [vmem:[%s706 + $0x14] sm:$0xf]
  %v713 = vld [vmem:[%s706 + $0x18] sm:$0xf]
  %v714 = vld [vmem:[%s706 + $0x1c] sm:$0xf]
  %v715 = vld [vmem:[%s706 + $0x20] sm:$0xf]
  %v716 = vld [vmem:[%s706 + $0x24] sm:$0xf]
  %v717 = vld [vmem:[%s706 + $0x28] sm:$0xf]
  %v718 = vld [vmem:[%s706 + $0x2c] sm:$0xf]
  %v719 = vld [vmem:[%s706 + $0x30] sm:$0xf]
  %v720 = vld [vmem:[%s706 + $0x34] sm:$0xf]
  %v721 = vld [vmem:[%s706 + $0x38] sm:$0xf]
  %v722 = vld [vmem:[%s706 + $0x3c] sm:$0xf]
  %v723 = vperm.slane %v576, 0
  %v740 = vunpack.c.l.b16 %v707
  %v741 = vunpack.c.l.b16 %v708
  %v742 = vunpack.c.l.b16 %v709
  %v743 = vunpack.c.l.b16 %v710
  %v744 = vunpack.c.l.b16 %v711
  %v745 = vunpack.c.l.b16 %v712
  %v746 = vunpack.c.l.b16 %v713
  %v747 = vunpack.c.l.b16 %v714
  %v748 = vunpack.c.l.b16 %v715
  %v749 = vunpack.c.l.b16 %v716
  %v750 = vunpack.c.l.b16 %v717
  %v751 = vunpack.c.l.b16 %v718
  %v752 = vunpack.c.l.b16 %v719
  %v753 = vunpack.c.l.b16 %v720
  %v754 = vunpack.c.l.b16 %v721
  %v755 = vunpack.c.l.b16 %v722
  %v756 = vpack.c.b16 %v741, %v740
  %v757 = vpack.c.b16 %v743, %v742
  %v758 = vpack.c.b16 %v745, %v744
  %v759 = vpack.c.b16 %v747, %v746
  %v760 = vpack.c.b16 %v749, %v748
  %v761 = vpack.c.b16 %v751, %v750
  %v762 = vpack.c.b16 %v753, %v752
  %v763 = vpack.c.b16 %v755, %v754
  %772 = vmatpush.bf16.msra.mxu0 %v763
  %773 = vmatpush.bf16.msra.mxu0 %v762
  %774 = vmatpush.bf16.msra.mxu0 %v761
  %775 = vmatpush.bf16.msra.mxu0 %v760
  %776 = vmatpush.bf16.msra.mxu0 %v759
  %777 = vmatpush.bf16.msra.mxu0 %v758
  %778 = vmatpush.bf16.msra.mxu0 %v757
  %779 = vmatpush.bf16.msra.mxu0 %v756
  %780 = vmatmul.bf16.gmra.mxu0 %v705
  %v781 = vpop.f32.mrf.mxu0
  %v782 = vadd.f32 %v723, %v781
  %v783 = vpop.f32.mrf.mxu0
  %v784 = vadd.f32 %v723, %v783
  %785 = vdwg.mxu0
  %v786 = vadd.f32 %v665, %v782
  %v787 = vadd.f32 %v666, %v784
  %v788 = vsel %vm58, %v786, 0.0
  %789 = vadd.xlane.f32.xlu0 %v788
  %v790 = vpop.xlane.xlu0 %789
  %v791 = vsel %vm58, %v787, 0.0
  %792 = vadd.xlane.f32.xlu0 %v791
  %v793 = vpop.xlane.xlu0 %792
  %v794 = vmul.f32 %v790, %v90
  %v795 = vmul.f32 %v793, %v90
  %v796 = vsub.f32 %v786, %v794
  %v797 = vsub.f32 %v787, %v795
  %v798 = vmul.f32 %v796, %v796
  %v799 = vmul.f32 %v797, %v797
  %v800 = vsel %vm58, %v798, 0.0
  %801 = vadd.xlane.f32.xlu0 %v800
  %v802 = vpop.xlane.xlu0 %801
  %v803 = vsel %vm58, %v799, 0.0
  %804 = vadd.xlane.f32.xlu0 %v803
  %v805 = vpop.xlane.xlu0 %804
  %v806 = vmul.f32 %v802, %v90
  %v807 = vmul.f32 %v805, %v90
  %v808 = vadd.f32 %v806, 1e-05
  %v809 = vadd.f32 %v807, 1e-05
  %v810 = vrsqrt.pop %v808
  %v811 = vmul.f32 %v810, %v808
  %v812 = vmul.f32 %v811, %v810
  %v813 = vmul.f32 0.5, %v812
  %v814 = vsub.f32 1.5, %v813
  %v815 = vmul.f32 %v810, %v814
  %vm816 = vweird.f32 %v808
  %vm817 = vweird.f32 %v810
  %vm818 = vmor %vm816, %vm817
  %v819 = vsel %vm818, %v810, %v815
  %v820 = vrsqrt.pop %v809
  %v821 = vmul.f32 %v820, %v809
  %v822 = vmul.f32 %v821, %v820
  %v823 = vmul.f32 0.5, %v822
  %v824 = vsub.f32 1.5, %v823
  %v825 = vmul.f32 %v820, %v824
  %vm826 = vweird.f32 %v809
  %vm827 = vweird.f32 %v820
  %vm828 = vmor %vm826, %vm827
  %v829 = vsel %vm828, %v820, %v825
  %v830 = vmul.f32 %v796, %v819
  %v831 = vmul.f32 %v797, %v829
  %v832 = vperm.slane %v577, 0
  %v833 = vmul.f32 %v830, %v832
  %v834 = vmul.f32 %v831, %v832
  %v835 = vperm.slane %v578, 0
  %v836 = vadd.f32 %v833, %v835
  %v837 = vadd.f32 %v834, %v835
  %s838 = scalar_lea.vmem %s6, 24
  %v839 = vld [vmem:[%s838] sm:$0x1]
  %v840 = vpack.c.bf16 %v837, %v836
  %v841 = vld [vmem:[%s5] sm:$0xf]
  %v842 = vld [vmem:[%s5 + $0x4] sm:$0xf]
  %v843 = vld [vmem:[%s5 + $0x8] sm:$0xf]
  %v844 = vld [vmem:[%s5 + $0xc] sm:$0xf]
  %v845 = vperm.slane %v839, 0
  %v850 = vunpack.c.l.b16 %v841
  %v851 = vunpack.c.l.b16 %v842
  %v852 = vunpack.c.l.b16 %v843
  %v853 = vunpack.c.l.b16 %v844
  %v854 = vpack.c.b16 %v851, %v850
  %v855 = vpack.c.b16 %v853, %v852
  %v859 = vsel %vm58, %v840, 0
  %861 = vmatpush.bf16.msra.mxu0 0
  %862 = vmatpush.bf16.msra.mxu0 0
  %863 = vmatpush.bf16.msra.mxu0 0
  %864 = vmatpush.bf16.msra.mxu0 0
  %865 = vmatpush.bf16.msra.mxu0 0
  %866 = vmatpush.bf16.msra.mxu0 0
  %867 = vmatpush.bf16.msra.mxu0 %v855
  %868 = vmatpush.bf16.msra.mxu0 %v854
  %869 = vmatmul.bf16.gmra.mxu0 %v859
  %v870 = vpop.f32.mrf.mxu0
  %v871 = vadd.f32 %v845, %v870
  %v872 = vpop.f32.mrf.mxu0
  %v873 = vadd.f32 %v845, %v872
  %874 = vdwg.mxu0
  %875 = vst [vmem:[%s7] sm:$0xff] %v871
  %876 = vst [vmem:[%s7 + $0x8] sm:$0xff] %v873
  // Predicated region
  $region30: #{_generator_forward_jit.1} parent=0 // pred_check
    _
  $region31: #{_generator_forward_jit.1} parent=0 // pred_check_branch
    %878 = sbr.rel (0) target = $region33
  $region32: #{_generator_forward_jit.1} parent=0 // pred_region
    _
  $region33: #{_generator_forward_jit.1} parent=0 // pred_fallthru
    _
  // Predicated region
  $region34: #{_generator_forward_jit.1} parent=0 // pred_check
    _
  $region35: #{_generator_forward_jit.1} parent=0 // pred_check_branch
    %880 = sbr.rel (0) target = $region37
  $region36: #{_generator_forward_jit.1} parent=0 // pred_region
    _
  $region37: #{_generator_forward_jit.1} parent=0 // pred_fallthru
    _

</llo_original>
